<compile_context>
chip_gen: v6e
topology: v6e:2x2x1
jax: 0.10.0
libtpu: 0.0.40
codegen_flags: <defaults>
</compile_context>

<pallas_src>
import functools
import math

import jax
import jax.numpy as jnp
from jax import lax
from jax.experimental import pallas as pl
from jax.experimental.pallas import tpu as pltpu

LANE = 128
_VMEM_LIMIT = 48 * 1024 * 1024  # headroom under v7x's 64 MiB physical VMEM


def _round_up(x, m):
    return (x + m - 1) // m * m


def _pick_row_tile(r):
    for t in (512, 256, 128, 64, 32, 16, 8):
        if r % t == 0:
            return t
    return r


# ----------------------------------------------------------------------------
# In-kernel helpers
# ----------------------------------------------------------------------------

def _mish(x):
    # mish(x) = x * tanh(softplus(x)) = x * n / (n + 2),  n = e^x (e^x + 2).
    # Single exp + approx reciprocal (EUP-friendly) with a large-x clamp.
    e = jnp.exp(jnp.minimum(x, 20.0))
    n = e * (e + 2.0)
    y = x * n * pl.reciprocal(n + 2.0, approx=True)
    return jnp.where(x > 20.0, x, y)


# ----------------------------------------------------------------------------
# Pallas kernels
# ----------------------------------------------------------------------------

def conv1_bn_mish_kernel(p_ref, w_ref, scale_ref, shift_ref, o_ref):
    # (TM, K1p) bf16 @ (K1p, Zp) bf16 -> f32 -> BN affine -> Mish -> f32 out.
    y = jnp.dot(p_ref[...], w_ref[...], preferred_element_type=jnp.float32)
    y = y * scale_ref[...] + shift_ref[...]
    o_ref[...] = _mish(y).astype(o_ref.dtype)


def conv2_skip_mean_fc_kernel(hp_ref, xs_ref, w2_ref, ws_ref, scale_ref,
                              shift_ref, wfc_ref, bfc_ref, o_ref, *, H2, W2):
    # One batch element per grid step.
    #   hp_ref : (H2+2, W2+2, Zp) f32   spatially zero-padded conv1 output
    #   xs_ref : (R, Cp)          bf16  1x1-stride-2 sampled input (skip path)
    #   w2_ref : (9, Zp, Zp)      bf16  3x3 conv weights (kh*3+kw major)
    #   ws_ref : (Cp, Zp)         bf16  skip 1x1 weights
    #   scale/shift : (1, Zp) f32       BN affine (skip bias folded into shift)
    #   wfc/bfc     : (Zp, Zp)/(1, Zp) f32
    #   o_ref  : (1, Zp) f32            latent for this batch element
    Zp = o_ref.shape[-1]
    R = H2 * W2
    acc = jnp.zeros((R, Zp), jnp.float32)
    for k in range(9):                       # 3x3 window matmuls, no HBM im2col
        ki, kj = divmod(k, 3)
        win = hp_ref[ki:ki + H2, kj:kj + W2, :].reshape(R, Zp)
        acc = acc + jnp.dot(win.astype(jnp.bfloat16), w2_ref[k],
                            preferred_element_type=jnp.float32)
    main = acc * scale_ref[...] + shift_ref[...]
    skip = jnp.dot(xs_ref[...], ws_ref[...], preferred_element_type=jnp.float32)
    y = _mish(main + skip)
    mean = jnp.sum(y, axis=0, keepdims=True) * (1.0 / R)          # (1, Zp)
    o_ref[...] = (jnp.dot(mean, wfc_ref[...],
                          preferred_element_type=jnp.float32) + bfc_ref[...])


# ----------------------------------------------------------------------------
# JAX glue: im2col (conv1 only) + wrapper
# ----------------------------------------------------------------------------

def _im2col(x, k, stride, pad):
    """x: (B, H, W, C) NHWC -> (B, Ho, Wo, k*k*C), (kh, kw, c) minor order."""
    B, H, W, C = x.shape
    xp = jnp.pad(x, ((0, 0), (pad, pad), (pad, pad), (0, 0)))
    Ho = (H + 2 * pad - k) // stride + 1
    Wo = (W + 2 * pad - k) // stride + 1
    cols = []
    for ki in range(k):
        for kj in range(k):
            cols.append(
                xp[:, ki:ki + stride * Ho:stride, kj:kj + stride * Wo:stride, :])
    patches = jnp.stack(cols, axis=3)          # (B, Ho, Wo, k*k, C)
    return patches.reshape(B, Ho, Wo, k * k * C)


def init_params(key, nc_in, z_dims):
    ks = jax.random.split(key, 9)
    return {
        # conv1: 3x3, stride 2 (HWIO)
        "w1": 0.1 * jax.random.normal(ks[0], (3, 3, nc_in, z_dims), jnp.float32),
        "scale1": 1.0 + 0.05 * jax.random.normal(ks[1], (1, z_dims), jnp.float32),
        "shift1": 0.05 * jax.random.normal(ks[2], (1, z_dims), jnp.float32),
        # conv2: 3x3, stride 1 (HWIO)
        "w2": 0.05 * jax.random.normal(ks[3], (3, 3, z_dims, z_dims), jnp.float32),
        "scale2": 1.0 + 0.05 * jax.random.normal(ks[4], (1, z_dims), jnp.float32),
        "shift2": 0.05 * jax.random.normal(ks[5], (1, z_dims), jnp.float32),
        # skip conv: 1x1, stride 2, with bias
        "ws": 0.1 * jax.random.normal(ks[6], (nc_in, z_dims), jnp.float32),
        "bs": 0.05 * jax.random.normal(ks[7], (1, z_dims), jnp.float32),
        # FullyConnectedLayer (StyleGAN): weight ~ randn(out, in), bias_init=0
        "w_fc": jax.random.normal(ks[8], (z_dims, z_dims), jnp.float32),
        "b_fc": jnp.zeros((1, z_dims), jnp.float32),
    }


@jax.jit
def light_featmap_to_latent(x_nchw, params):
    """x_nchw: (B, C_in, H, W) float32 -> (B, z_dims) float32."""
    x = jnp.transpose(x_nchw, (0, 2, 3, 1))              # NCHW -> NHWC
    B, H, W, Cin = x.shape
    Z = params["w1"].shape[-1]
    Zp = _round_up(Z, LANE)                              # lane-dense channels
    Cp = _round_up(Cin, LANE)

    # ---- conv1 (3x3, stride 2, pad 1) + BN + Mish, gridded over rows ----
    p1 = _im2col(x, 3, 2, 1)                             # (B, H2, W2, 9*Cin)
    H2, W2 = p1.shape[1], p1.shape[2]
    R = H2 * W2
    K1 = 9 * Cin
    K1p = _round_up(K1, LANE)                            # lane-dense K
    p1 = jnp.pad(p1.reshape(B, R, K1).astype(jnp.bfloat16),
                 ((0, 0), (0, 0), (0, K1p - K1)))
    w1 = jnp.pad(params["w1"].reshape(K1, Z),
                 ((0, K1p - K1), (0, Zp - Z))).astype(jnp.bfloat16)
    scale1 = jnp.pad(params["scale1"], ((0, 0), (0, Zp - Z)))
    shift1 = jnp.pad(params["shift1"], ((0, 0), (0, Zp - Z)))

    TM = _pick_row_tile(R)
    h = pl.pallas_call(
        conv1_bn_mish_kernel,
        out_shape=jax.ShapeDtypeStruct((B, R, Zp), jnp.float32),
        grid=(B, R // TM),
        in_specs=[
            pl.BlockSpec((None, TM, K1p), lambda b, i: (b, i, 0)),
            pl.BlockSpec((K1p, Zp), lambda b, i: (0, 0)),
            pl.BlockSpec((1, Zp), lambda b, i: (0, 0)),
            pl.BlockSpec((1, Zp), lambda b, i: (0, 0)),
        ],
        out_specs=pl.BlockSpec((None, TM, Zp), lambda b, i: (b, i, 0)),
        compiler_params=pltpu.CompilerParams(
            dimension_semantics=("parallel", "parallel"),
            vmem_limit_bytes=_VMEM_LIMIT),
    )(p1, w1, scale1, shift1)

    # ---- conv2 (3x3 s1 p1) + BN + skip(1x1 s2) + Mish + mean + FC, fused ----
    h_pad = jnp.pad(h.reshape(B, H2, W2, Zp), ((0, 0), (1, 1), (1, 1), (0, 0)))
    xs = jnp.pad(x[:, ::2, ::2, :].reshape(B, R, Cin).astype(jnp.bfloat16),
                 ((0, 0), (0, 0), (0, Cp - Cin)))        # skip-path samples
    w2 = jnp.pad(params["w2"], ((0, 0), (0, 0), (0, Zp - Z), (0, Zp - Z)))
    w2 = w2.reshape(9, Zp, Zp).astype(jnp.bfloat16)
    ws = jnp.pad(params["ws"], ((0, Cp - Cin), (0, Zp - Z))).astype(jnp.bfloat16)
    scale2 = jnp.pad(params["scale2"], ((0, 0), (0, Zp - Z)))
    shift2 = jnp.pad(params["shift2"] + params["bs"],    # fold skip bias
                     ((0, 0), (0, Zp - Z)))
    weight_gain = 1.0 / math.sqrt(Z)                     # lr_multiplier = 1
    wfc = jnp.pad((params["w_fc"] * weight_gain).T, ((0, Zp - Z), (0, Zp - Z)))
    bfc = jnp.pad(params["b_fc"], ((0, 0), (0, Zp - Z)))

    kernel = functools.partial(conv2_skip_mean_fc_kernel, H2=H2, W2=W2)
    out = pl.pallas_call(
        kernel,
        out_shape=jax.ShapeDtypeStruct((B, 1, Zp), jnp.float32),
        grid=(B,),
        in_specs=[
            pl.BlockSpec((None, H2 + 2, W2 + 2, Zp), lambda b: (b, 0, 0, 0)),
            pl.BlockSpec((None, R, Cp), lambda b: (b, 0, 0)),
            pl.BlockSpec((9, Zp, Zp), lambda b: (0, 0, 0)),
            pl.BlockSpec((Cp, Zp), lambda b: (0, 0)),
            pl.BlockSpec((1, Zp), lambda b: (0, 0)),
            pl.BlockSpec((1, Zp), lambda b: (0, 0)),
            pl.BlockSpec((Zp, Zp), lambda b: (0, 0)),
            pl.BlockSpec((1, Zp), lambda b: (0, 0)),
        ],
        out_specs=pl.BlockSpec((None, 1, Zp), lambda b: (b, 0, 0)),
        compiler_params=pltpu.CompilerParams(
            dimension_semantics=("parallel",),
            vmem_limit_bytes=_VMEM_LIMIT),
    )(h_pad, xs, w2, ws, scale2, shift2, wfc, bfc)

    return out[:, 0, :Z]


# ----------------------------------------------------------------------------
# Pure-JAX reference (f32) for a tolerance check of the bf16/fused kernels.
# ----------------------------------------------------------------------------

def _reference_forward(x_nchw, params):
    x = jnp.transpose(x_nchw, (0, 2, 3, 1))
    Z = params["w1"].shape[-1]
    mish = lambda v: v * jnp.tanh(jax.nn.softplus(v))
    dn = ("NHWC", "HWIO", "NHWC")
    h = lax.conv_general_dilated(x, params["w1"], (2, 2), ((1, 1), (1, 1)),
                                 dimension_numbers=dn)
    h = mish(h * params["scale1"] + params["shift1"])
    main = lax.conv_general_dilated(h, params["w2"], (1, 1), ((1, 1), (1, 1)),
                                    dimension_numbers=dn)
    main = main * params["scale2"] + params["shift2"]
    skip = lax.conv_general_dilated(
        x, params["ws"].reshape(1, 1, *params["ws"].shape), (2, 2), "VALID",
        dimension_numbers=dn) + params["bs"]
    y = mish(main + skip)
    feat = jnp.mean(y, axis=(1, 2))
    wt = (params["w_fc"] / jnp.sqrt(jnp.float32(Z))).T
    return feat @ wt + params["b_fc"]


if __name__ == "__main__":
    B, NC_IN, HW, Z_DIMS = 2, 4, 16, 32
    key = jax.random.PRNGKey(0)
    k_param, k_x = jax.random.split(key)

    params = init_params(k_param, NC_IN, Z_DIMS)
    x = jax.random.normal(k_x, (B, NC_IN, HW, HW), jnp.float32)  # NCHW

    out = jax.block_until_ready(light_featmap_to_latent(x, params))
    assert out.shape == (B, Z_DIMS), out.shape
    assert out.dtype == jnp.float32
    assert bool(jnp.all(jnp.isfinite(out)))

    ref = _reference_forward(x, params)
    max_err = float(jnp.max(jnp.abs(out - ref)))
    assert max_err < 3e-2, f"max abs err vs f32 reference: {max_err}"
    print("KERNEL_OK")
</pallas_src>

<mosaic_0001>
module attributes {stable_mosaic.version = 11 : i64} {
  func.func @conv1_bn_mish_kernel(%arg0: i32, %arg1: i32, %arg2: memref<1x64x128xbf16, #tpu.memory_space<vmem>>, %arg3: memref<128x128xbf16, #tpu.memory_space<vmem>>, %arg4: memref<1x128xf32, #tpu.memory_space<vmem>>, %arg5: memref<1x128xf32, #tpu.memory_space<vmem>>, %arg6: memref<1x64x128xf32, #tpu.memory_space<vmem>>) attributes {dimension_semantics = [#tpu.dimension_semantics<parallel>, #tpu.dimension_semantics<parallel>], iteration_bounds = array<i64: 2, 1>, scalar_prefetch = 0 : i64, scratch_operands = 0 : i64, tpu.core_type = #tpu.core_type<tc>, window_params = [{transform_indices = @transform_0, window_bounds = array<i64: 1, 64, 128>}, {pipeline_mode = #tpu.pipeline_mode<synchronous>, transform_indices = @transform_1, window_bounds = array<i64: 128, 128>}, {pipeline_mode = #tpu.pipeline_mode<synchronous>, transform_indices = @transform_2, window_bounds = array<i64: 1, 128>}, {pipeline_mode = #tpu.pipeline_mode<synchronous>, transform_indices = @transform_3, window_bounds = array<i64: 1, 128>}, {transform_indices = @transform_4, window_bounds = array<i64: 1, 64, 128>}]} {
    %c0 = arith.constant 0 : index
    %c0_0 = arith.constant 0 : index
    %c0_1 = arith.constant 0 : index
    %0 = vector.load %arg2[%c0, %c0_0, %c0_1] : memref<1x64x128xbf16, #tpu.memory_space<vmem>>, vector<1x64x128xbf16>
    %1 = vector.shape_cast %0 : vector<1x64x128xbf16> to vector<64x128xbf16>
    %c0_2 = arith.constant 0 : index
    %c0_3 = arith.constant 0 : index
    %2 = vector.load %arg3[%c0_2, %c0_3] : memref<128x128xbf16, #tpu.memory_space<vmem>>, vector<128x128xbf16>
    %cst = arith.constant dense<0.000000e+00> : vector<64x128xf32>
    %3 = tpu.matmul %1, %2, %cst {dimension_numbers = #tpu.dot_dimension_numbers<[1], [0], [0], [1], [0, 0, 1, 1], [], []>} : vector<64x128xbf16>, vector<128x128xbf16>, vector<64x128xf32> -> vector<64x128xf32>
    %c0_4 = arith.constant 0 : index
    %c0_5 = arith.constant 0 : index
    %4 = vector.load %arg4[%c0_4, %c0_5] : memref<1x128xf32, #tpu.memory_space<vmem>>, vector<1x128xf32>
    %5 = vector.broadcast %4 : vector<1x128xf32> to vector<64x128xf32>
    %6 = arith.mulf %3, %5 : vector<64x128xf32>
    %c0_6 = arith.constant 0 : index
    %c0_7 = arith.constant 0 : index
    %7 = vector.load %arg5[%c0_6, %c0_7] : memref<1x128xf32, #tpu.memory_space<vmem>>, vector<1x128xf32>
    %8 = vector.broadcast %7 : vector<1x128xf32> to vector<64x128xf32>
    %9 = arith.addf %6, %8 : vector<64x128xf32>
    %cst_8 = arith.constant 2.000000e+01 : f32
    %10 = vector.broadcast %cst_8 : f32 to vector<64x128xf32>
    %11 = arith.minimumf %9, %10 : vector<64x128xf32>
    %12 = math.exp %11 : vector<64x128xf32>
    %cst_9 = arith.constant 2.000000e+00 : f32
    %13 = vector.broadcast %cst_9 : f32 to vector<64x128xf32>
    %14 = arith.addf %12, %13 : vector<64x128xf32>
    %15 = arith.mulf %12, %14 : vector<64x128xf32>
    %16 = arith.mulf %9, %15 : vector<64x128xf32>
    %cst_10 = arith.constant 2.000000e+00 : f32
    %17 = vector.broadcast %cst_10 : f32 to vector<64x128xf32>
    %18 = arith.addf %15, %17 : vector<64x128xf32>
    %19 = tpu.reciprocal %18 {approx = true} : vector<64x128xf32> -> vector<64x128xf32>
    %20 = arith.mulf %16, %19 : vector<64x128xf32>
    %cst_11 = arith.constant 2.000000e+01 : f32
    %21 = vector.broadcast %cst_11 : f32 to vector<64x128xf32>
    %22 = arith.cmpf ogt, %9, %21 : vector<64x128xf32>
    %23 = arith.select %22, %9, %20 : vector<64x128xi1>, vector<64x128xf32>
    %c0_12 = arith.constant 0 : index
    %c0_13 = arith.constant 0 : index
    %c0_14 = arith.constant 0 : index
    %24 = vector.load %arg6[%c0_12, %c0_13, %c0_14] : memref<1x64x128xf32, #tpu.memory_space<vmem>>, vector<1x64x128xf32>
    %25 = vector.shape_cast %24 : vector<1x64x128xf32> to vector<64x128xf32>
    %26 = vector.shape_cast %23 : vector<64x128xf32> to vector<1x64x128xf32>
    tpu.vector_store %arg6[%c0_12, %c0_13, %c0_14], %26 {strides = array<i32>} : memref<1x64x128xf32, #tpu.memory_space<vmem>>, vector<1x64x128xf32>,
    return
  }
  func.func @transform_0(%arg0: i32, %arg1: i32) -> (i32, i32, i32) {
    %c0_i32 = arith.constant 0 : i32
    %c0_i32_0 = arith.constant 0 : i32
    return %arg0, %arg1, %c0_i32 : i32, i32, i32
  }
  func.func @transform_1(%arg0: i32, %arg1: i32) -> (i32, i32) {
    %c0_i32 = arith.constant 0 : i32
    %c0_i32_0 = arith.constant 0 : i32
    %c0_i32_1 = arith.constant 0 : i32
    return %c0_i32, %c0_i32_0 : i32, i32
  }
  func.func @transform_2(%arg0: i32, %arg1: i32) -> (i32, i32) {
    %c0_i32 = arith.constant 0 : i32
    %c0_i32_0 = arith.constant 0 : i32
    %c0_i32_1 = arith.constant 0 : i32
    return %c0_i32, %c0_i32_0 : i32, i32
  }
  func.func @transform_3(%arg0: i32, %arg1: i32) -> (i32, i32) {
    %c0_i32 = arith.constant 0 : i32
    %c0_i32_0 = arith.constant 0 : i32
    %c0_i32_1 = arith.constant 0 : i32
    return %c0_i32, %c0_i32_0 : i32, i32
  }
  func.func @transform_4(%arg0: i32, %arg1: i32) -> (i32, i32, i32) {
    %c0_i32 = arith.constant 0 : i32
    %c0_i32_0 = arith.constant 0 : i32
    return %arg0, %arg1, %c0_i32 : i32, i32, i32
  }
}

module attributes {stable_mosaic.version = 11 : i64} {
  func.func @conv2_skip_mean_fc_kernel(%arg0: i32, %arg1: memref<1x10x10x128xf32, #tpu.memory_space<vmem>>, %arg2: memref<1x64x128xbf16, #tpu.memory_space<vmem>>, %arg3: memref<9x128x128xbf16, #tpu.memory_space<vmem>>, %arg4: memref<128x128xbf16, #tpu.memory_space<vmem>>, %arg5: memref<1x128xf32, #tpu.memory_space<vmem>>, %arg6: memref<1x128xf32, #tpu.memory_space<vmem>>, %arg7: memref<128x128xf32, #tpu.memory_space<vmem>>, %arg8: memref<1x128xf32, #tpu.memory_space<vmem>>, %arg9: memref<1x1x128xf32, #tpu.memory_space<vmem>>) attributes {dimension_semantics = [#tpu.dimension_semantics<parallel>], iteration_bounds = array<i64: 2>, scalar_prefetch = 0 : i64, scratch_operands = 0 : i64, tpu.core_type = #tpu.core_type<tc>, window_params = [{transform_indices = @transform_0, window_bounds = array<i64: 1, 10, 10, 128>}, {transform_indices = @transform_1, window_bounds = array<i64: 1, 64, 128>}, {pipeline_mode = #tpu.pipeline_mode<synchronous>, transform_indices = @transform_2, window_bounds = array<i64: 9, 128, 128>}, {pipeline_mode = #tpu.pipeline_mode<synchronous>, transform_indices = @transform_3, window_bounds = array<i64: 128, 128>}, {pipeline_mode = #tpu.pipeline_mode<synchronous>, transform_indices = @transform_4, window_bounds = array<i64: 1, 128>}, {pipeline_mode = #tpu.pipeline_mode<synchronous>, transform_indices = @transform_5, window_bounds = array<i64: 1, 128>}, {pipeline_mode = #tpu.pipeline_mode<synchronous>, transform_indices = @transform_6, window_bounds = array<i64: 128, 128>}, {pipeline_mode = #tpu.pipeline_mode<synchronous>, transform_indices = @transform_7, window_bounds = array<i64: 1, 128>}, {transform_indices = @transform_8, window_bounds = array<i64: 1, 1, 128>}]} {
    %cst = arith.constant 0.000000e+00 : f32
    %0 = vector.broadcast %cst : f32 to vector<64x128xf32>
    %c0 = arith.constant 0 : index
    %c0_0 = arith.constant 0 : index
    %c0_1 = arith.constant 0 : index
    %c0_2 = arith.constant 0 : index
    %1 = vector.load %arg1[%c0, %c0_0, %c0_1, %c0_2] : memref<1x10x10x128xf32, #tpu.memory_space<vmem>>, vector<1x8x8x128xf32>
    %2 = vector.shape_cast %1 : vector<1x8x8x128xf32> to vector<8x8x128xf32>
    %3 = vector.shape_cast %2 : vector<8x8x128xf32> to vector<64x128xf32>
    %4 = arith.truncf %3 : vector<64x128xf32> to vector<64x128xbf16>
    %c0_3 = arith.constant 0 : index
    %c0_4 = arith.constant 0 : index
    %c0_5 = arith.constant 0 : index
    %5 = vector.load %arg3[%c0_3, %c0_4, %c0_5] : memref<9x128x128xbf16, #tpu.memory_space<vmem>>, vector<1x128x128xbf16>
    %6 = vector.shape_cast %5 : vector<1x128x128xbf16> to vector<128x128xbf16>
    %cst_6 = arith.constant dense<0.000000e+00> : vector<64x128xf32>
    %7 = tpu.matmul %4, %6, %cst_6 {dimension_numbers = #tpu.dot_dimension_numbers<[1], [0], [0], [1], [0, 0, 1, 1], [], []>} : vector<64x128xbf16>, vector<128x128xbf16>, vector<64x128xf32> -> vector<64x128xf32>
    %8 = arith.addf %0, %7 : vector<64x128xf32>
    %c0_7 = arith.constant 0 : index
    %c0_8 = arith.constant 0 : index
    %c1 = arith.constant 1 : index
    %c0_9 = arith.constant 0 : index
    %9 = vector.load %arg1[%c0_7, %c0_8, %c1, %c0_9] : memref<1x10x10x128xf32, #tpu.memory_space<vmem>>, vector<1x8x8x128xf32>
    %10 = vector.shape_cast %9 : vector<1x8x8x128xf32> to vector<8x8x128xf32>
    %11 = vector.shape_cast %10 : vector<8x8x128xf32> to vector<64x128xf32>
    %12 = arith.truncf %11 : vector<64x128xf32> to vector<64x128xbf16>
    %c1_10 = arith.constant 1 : index
    %c0_11 = arith.constant 0 : index
    %c0_12 = arith.constant 0 : index
    %13 = vector.load %arg3[%c1_10, %c0_11, %c0_12] : memref<9x128x128xbf16, #tpu.memory_space<vmem>>, vector<1x128x128xbf16>
    %14 = vector.shape_cast %13 : vector<1x128x128xbf16> to vector<128x128xbf16>
    %cst_13 = arith.constant dense<0.000000e+00> : vector<64x128xf32>
    %15 = tpu.matmul %12, %14, %cst_13 {dimension_numbers = #tpu.dot_dimension_numbers<[1], [0], [0], [1], [0, 0, 1, 1], [], []>} : vector<64x128xbf16>, vector<128x128xbf16>, vector<64x128xf32> -> vector<64x128xf32>
    %16 = arith.addf %8, %15 : vector<64x128xf32>
    %c0_14 = arith.constant 0 : index
    %c0_15 = arith.constant 0 : index
    %c2 = arith.constant 2 : index
    %c0_16 = arith.constant 0 : index
    %17 = vector.load %arg1[%c0_14, %c0_15, %c2, %c0_16] : memref<1x10x10x128xf32, #tpu.memory_space<vmem>>, vector<1x8x8x128xf32>
    %18 = vector.shape_cast %17 : vector<1x8x8x128xf32> to vector<8x8x128xf32>
    %19 = vector.shape_cast %18 : vector<8x8x128xf32> to vector<64x128xf32>
    %20 = arith.truncf %19 : vector<64x128xf32> to vector<64x128xbf16>
    %c2_17 = arith.constant 2 : index
    %c0_18 = arith.constant 0 : index
    %c0_19 = arith.constant 0 : index
    %21 = vector.load %arg3[%c2_17, %c0_18, %c0_19] : memref<9x128x128xbf16, #tpu.memory_space<vmem>>, vector<1x128x128xbf16>
    %22 = vector.shape_cast %21 : vector<1x128x128xbf16> to vector<128x128xbf16>
    %cst_20 = arith.constant dense<0.000000e+00> : vector<64x128xf32>
    %23 = tpu.matmul %20, %22, %cst_20 {dimension_numbers = #tpu.dot_dimension_numbers<[1], [0], [0], [1], [0, 0, 1, 1], [], []>} : vector<64x128xbf16>, vector<128x128xbf16>, vector<64x128xf32> -> vector<64x128xf32>
    %24 = arith.addf %16, %23 : vector<64x128xf32>
    %c0_21 = arith.constant 0 : index
    %c1_22 = arith.constant 1 : index
    %c0_23 = arith.constant 0 : index
    %c0_24 = arith.constant 0 : index
    %25 = vector.load %arg1[%c0_21, %c1_22, %c0_23, %c0_24] : memref<1x10x10x128xf32, #tpu.memory_space<vmem>>, vector<1x8x8x128xf32>
    %26 = vector.shape_cast %25 : vector<1x8x8x128xf32> to vector<8x8x128xf32>
    %27 = vector.shape_cast %26 : vector<8x8x128xf32> to vector<64x128xf32>
    %28 = arith.truncf %27 : vector<64x128xf32> to vector<64x128xbf16>
    %c3 = arith.constant 3 : index
    %c0_25 = arith.constant 0 : index
    %c0_26 = arith.constant 0 : index
    %29 = vector.load %arg3[%c3, %c0_25, %c0_26] : memref<9x128x128xbf16, #tpu.memory_space<vmem>>, vector<1x128x128xbf16>
    %30 = vector.shape_cast %29 : vector<1x128x128xbf16> to vector<128x128xbf16>
    %cst_27 = arith.constant dense<0.000000e+00> : vector<64x128xf32>
    %31 = tpu.matmul %28, %30, %cst_27 {dimension_numbers = #tpu.dot_dimension_numbers<[1], [0], [0], [1], [0, 0, 1, 1], [], []>} : vector<64x128xbf16>, vector<128x128xbf16>, vector<64x128xf32> -> vector<64x128xf32>
    %32 = arith.addf %24, %31 : vector<64x128xf32>
    %c0_28 = arith.constant 0 : index
    %c1_29 = arith.constant 1 : index
    %c1_30 = arith.constant 1 : index
    %c0_31 = arith.constant 0 : index
    %33 = vector.load %arg1[%c0_28, %c1_29, %c1_30, %c0_31] : memref<1x10x10x128xf32, #tpu.memory_space<vmem>>, vector<1x8x8x128xf32>
    %34 = vector.shape_cast %33 : vector<1x8x8x128xf32> to vector<8x8x128xf32>
    %35 = vector.shape_cast %34 : vector<8x8x128xf32> to vector<64x128xf32>
    %36 = arith.truncf %35 : vector<64x128xf32> to vector<64x128xbf16>
    %c4 = arith.constant 4 : index
    %c0_32 = arith.constant 0 : index
    %c0_33 = arith.constant 0 : index
    %37 = vector.load %arg3[%c4, %c0_32, %c0_33] : memref<9x128x128xbf16, #tpu.memory_space<vmem>>, vector<1x128x128xbf16>
    %38 = vector.shape_cast %37 : vector<1x128x128xbf16> to vector<128x128xbf16>
    %cst_34 = arith.constant dense<0.000000e+00> : vector<64x128xf32>
    %39 = tpu.matmul %36, %38, %cst_34 {dimension_numbers = #tpu.dot_dimension_numbers<[1], [0], [0], [1], [0, 0, 1, 1], [], []>} : vector<64x128xbf16>, vector<128x128xbf16>, vector<64x128xf32> -> vector<64x128xf32>
    %40 = arith.addf %32, %39 : vector<64x128xf32>
    %c0_35 = arith.constant 0 : index
    %c1_36 = arith.constant 1 : index
    %c2_37 = arith.constant 2 : index
    %c0_38 = arith.constant 0 : index
    %41 = vector.load %arg1[%c0_35, %c1_36, %c2_37, %c0_38] : memref<1x10x10x128xf32, #tpu.memory_space<vmem>>, vector<1x8x8x128xf32>
    %42 = vector.shape_cast %41 : vector<1x8x8x128xf32> to vector<8x8x128xf32>
    %43 = vector.shape_cast %42 : vector<8x8x128xf32> to vector<64x128xf32>
    %44 = arith.truncf %43 : vector<64x128xf32> to vector<64x128xbf16>
    %c5 = arith.constant 5 : index
    %c0_39 = arith.constant 0 : index
    %c0_40 = arith.constant 0 : index
    %45 = vector.load %arg3[%c5, %c0_39, %c0_40] : memref<9x128x128xbf16, #tpu.memory_space<vmem>>, vector<1x128x128xbf16>
    %46 = vector.shape_cast %45 : vector<1x128x128xbf16> to vector<128x128xbf16>
    %cst_41 = arith.constant dense<0.000000e+00> : vector<64x128xf32>
    %47 = tpu.matmul %44, %46, %cst_41 {dimension_numbers = #tpu.dot_dimension_numbers<[1], [0], [0], [1], [0, 0, 1, 1], [], []>} : vector<64x128xbf16>, vector<128x128xbf16>, vector<64x128xf32> -> vector<64x128xf32>
    %48 = arith.addf %40, %47 : vector<64x128xf32>
    %c0_42 = arith.constant 0 : index
    %c2_43 = arith.constant 2 : index
    %c0_44 = arith.constant 0 : index
    %c0_45 = arith.constant 0 : index
    %49 = vector.load %arg1[%c0_42, %c2_43, %c0_44, %c0_45] : memref<1x10x10x128xf32, #tpu.memory_space<vmem>>, vector<1x8x8x128xf32>
    %50 = vector.shape_cast %49 : vector<1x8x8x128xf32> to vector<8x8x128xf32>
    %51 = vector.shape_cast %50 : vector<8x8x128xf32> to vector<64x128xf32>
    %52 = arith.truncf %51 : vector<64x128xf32> to vector<64x128xbf16>
    %c6 = arith.constant 6 : index
    %c0_46 = arith.constant 0 : index
    %c0_47 = arith.constant 0 : index
    %53 = vector.load %arg3[%c6, %c0_46, %c0_47] : memref<9x128x128xbf16, #tpu.memory_space<vmem>>, vector<1x128x128xbf16>
    %54 = vector.shape_cast %53 : vector<1x128x128xbf16> to vector<128x128xbf16>
    %cst_48 = arith.constant dense<0.000000e+00> : vector<64x128xf32>
    %55 = tpu.matmul %52, %54, %cst_48 {dimension_numbers = #tpu.dot_dimension_numbers<[1], [0], [0], [1], [0, 0, 1, 1], [], []>} : vector<64x128xbf16>, vector<128x128xbf16>, vector<64x128xf32> -> vector<64x128xf32>
    %56 = arith.addf %48, %55 : vector<64x128xf32>
    %c0_49 = arith.constant 0 : index
    %c2_50 = arith.constant 2 : index
    %c1_51 = arith.constant 1 : index
    %c0_52 = arith.constant 0 : index
    %57 = vector.load %arg1[%c0_49, %c2_50, %c1_51, %c0_52] : memref<1x10x10x128xf32, #tpu.memory_space<vmem>>, vector<1x8x8x128xf32>
    %58 = vector.shape_cast %57 : vector<1x8x8x128xf32> to vector<8x8x128xf32>
    %59 = vector.shape_cast %58 : vector<8x8x128xf32> to vector<64x128xf32>
    %60 = arith.truncf %59 : vector<64x128xf32> to vector<64x128xbf16>
    %c7 = arith.constant 7 : index
    %c0_53 = arith.constant 0 : index
    %c0_54 = arith.constant 0 : index
    %61 = vector.load %arg3[%c7, %c0_53, %c0_54] : memref<9x128x128xbf16, #tpu.memory_space<vmem>>, vector<1x128x128xbf16>
    %62 = vector.shape_cast %61 : vector<1x128x128xbf16> to vector<128x128xbf16>
    %cst_55 = arith.constant dense<0.000000e+00> : vector<64x128xf32>
    %63 = tpu.matmul %60, %62, %cst_55 {dimension_numbers = #tpu.dot_dimension_numbers<[1], [0], [0], [1], [0, 0, 1, 1], [], []>} : vector<64x128xbf16>, vector<128x128xbf16>, vector<64x128xf32> -> vector<64x128xf32>
    %64 = arith.addf %56, %63 : vector<64x128xf32>
    %c0_56 = arith.constant 0 : index
    %c2_57 = arith.constant 2 : index
    %c2_58 = arith.constant 2 : index
    %c0_59 = arith.constant 0 : index
    %65 = vector.load %arg1[%c0_56, %c2_57, %c2_58, %c0_59] : memref<1x10x10x128xf32, #tpu.memory_space<vmem>>, vector<1x8x8x128xf32>
    %66 = vector.shape_cast %65 : vector<1x8x8x128xf32> to vector<8x8x128xf32>
    %67 = vector.shape_cast %66 : vector<8x8x128xf32> to vector<64x128xf32>
    %68 = arith.truncf %67 : vector<64x128xf32> to vector<64x128xbf16>
    %c8 = arith.constant 8 : index
    %c0_60 = arith.constant 0 : index
    %c0_61 = arith.constant 0 : index
    %69 = vector.load %arg3[%c8, %c0_60, %c0_61] : memref<9x128x128xbf16, #tpu.memory_space<vmem>>, vector<1x128x128xbf16>
    %70 = vector.shape_cast %69 : vector<1x128x128xbf16> to vector<128x128xbf16>
    %cst_62 = arith.constant dense<0.000000e+00> : vector<64x128xf32>
    %71 = tpu.matmul %68, %70, %cst_62 {dimension_numbers = #tpu.dot_dimension_numbers<[1], [0], [0], [1], [0, 0, 1, 1], [], []>} : vector<64x128xbf16>, vector<128x128xbf16>, vector<64x128xf32> -> vector<64x128xf32>
    %72 = arith.addf %64, %71 : vector<64x128xf32>
    %c0_63 = arith.constant 0 : index
    %c0_64 = arith.constant 0 : index
    %73 = vector.load %arg5[%c0_63, %c0_64] : memref<1x128xf32, #tpu.memory_space<vmem>>, vector<1x128xf32>
    %74 = vector.broadcast %73 : vector<1x128xf32> to vector<64x128xf32>
    %75 = arith.mulf %72, %74 : vector<64x128xf32>
    %c0_65 = arith.constant 0 : index
    %c0_66 = arith.constant 0 : index
    %76 = vector.load %arg6[%c0_65, %c0_66] : memref<1x128xf32, #tpu.memory_space<vmem>>, vector<1x128xf32>
    %77 = vector.broadcast %76 : vector<1x128xf32> to vector<64x128xf32>
    %78 = arith.addf %75, %77 : vector<64x128xf32>
    %c0_67 = arith.constant 0 : index
    %c0_68 = arith.constant 0 : index
    %c0_69 = arith.constant 0 : index
    %79 = vector.load %arg2[%c0_67, %c0_68, %c0_69] : memref<1x64x128xbf16, #tpu.memory_space<vmem>>, vector<1x64x128xbf16>
    %80 = vector.shape_cast %79 : vector<1x64x128xbf16> to vector<64x128xbf16>
    %c0_70 = arith.constant 0 : index
    %c0_71 = arith.constant 0 : index
    %81 = vector.load %arg4[%c0_70, %c0_71] : memref<128x128xbf16, #tpu.memory_space<vmem>>, vector<128x128xbf16>
    %cst_72 = arith.constant dense<0.000000e+00> : vector<64x128xf32>
    %82 = tpu.matmul %80, %81, %cst_72 {dimension_numbers = #tpu.dot_dimension_numbers<[1], [0], [0], [1], [0, 0, 1, 1], [], []>} : vector<64x128xbf16>, vector<128x128xbf16>, vector<64x128xf32> -> vector<64x128xf32>
    %83 = arith.addf %78, %82 : vector<64x128xf32>
    %cst_73 = arith.constant 2.000000e+01 : f32
    %84 = vector.broadcast %cst_73 : f32 to vector<64x128xf32>
    %85 = arith.minimumf %83, %84 : vector<64x128xf32>
    %86 = math.exp %85 : vector<64x128xf32>
    %cst_74 = arith.constant 2.000000e+00 : f32
    %87 = vector.broadcast %cst_74 : f32 to vector<64x128xf32>
    %88 = arith.addf %86, %87 : vector<64x128xf32>
    %89 = arith.mulf %86, %88 : vector<64x128xf32>
    %90 = arith.mulf %83, %89 : vector<64x128xf32>
    %cst_75 = arith.constant 2.000000e+00 : f32
    %91 = vector.broadcast %cst_75 : f32 to vector<64x128xf32>
    %92 = arith.addf %89, %91 : vector<64x128xf32>
    %93 = tpu.reciprocal %92 {approx = true} : vector<64x128xf32> -> vector<64x128xf32>
    %94 = arith.mulf %90, %93 : vector<64x128xf32>
    %cst_76 = arith.constant 2.000000e+01 : f32
    %95 = vector.broadcast %cst_76 : f32 to vector<64x128xf32>
    %96 = arith.cmpf ogt, %83, %95 : vector<64x128xf32>
    %97 = arith.select %96, %83, %94 : vector<64x128xi1>, vector<64x128xf32>
    %cst_77 = arith.constant dense<0.000000e+00> : vector<128xf32>
    %98 = vector.multi_reduction <add>, %97, %cst_77 [0] : vector<64x128xf32> to vector<128xf32>
    %99 = vector.shape_cast %98 : vector<128xf32> to vector<1x128xf32>
    %cst_78 = arith.constant 1.562500e-02 : f32
    %100 = vector.broadcast %cst_78 : f32 to vector<1x128xf32>
    %101 = arith.mulf %99, %100 : vector<1x128xf32>
    %c0_79 = arith.constant 0 : index
    %c0_80 = arith.constant 0 : index
    %102 = vector.load %arg7[%c0_79, %c0_80] : memref<128x128xf32, #tpu.memory_space<vmem>>, vector<128x128xf32>
    %cst_81 = arith.constant dense<0.000000e+00> : vector<1x128xf32>
    %103 = tpu.matmul %101, %102, %cst_81 {dimension_numbers = #tpu.dot_dimension_numbers<[1], [0], [0], [1], [0, 0, 1, 1], [], []>} : vector<1x128xf32>, vector<128x128xf32>, vector<1x128xf32> -> vector<1x128xf32>
    %c0_82 = arith.constant 0 : index
    %c0_83 = arith.constant 0 : index
    %104 = vector.load %arg8[%c0_82, %c0_83] : memref<1x128xf32, #tpu.memory_space<vmem>>, vector<1x128xf32>
    %105 = arith.addf %103, %104 : vector<1x128xf32>
    %c0_84 = arith.constant 0 : index
    %c0_85 = arith.constant 0 : index
    %c0_86 = arith.constant 0 : index
    %106 = vector.load %arg9[%c0_84, %c0_85, %c0_86] : memref<1x1x128xf32, #tpu.memory_space<vmem>>, vector<1x1x128xf32>
    %107 = vector.shape_cast %106 : vector<1x1x128xf32> to vector<1x128xf32>
    %108 = vector.shape_cast %105 : vector<1x128xf32> to vector<1x1x128xf32>
    tpu.vector_store %arg9[%c0_84, %c0_85, %c0_86], %108 {strides = array<i32>} : memref<1x1x128xf32, #tpu.memory_space<vmem>>, vector<1x1x128xf32>,
    return
  }
  func.func @transform_0(%arg0: i32) -> (i32, i32, i32, i32) {
    %c0_i32 = arith.constant 0 : i32
    %c0_i32_0 = arith.constant 0 : i32
    %c0_i32_1 = arith.constant 0 : i32
    %c0_i32_2 = arith.constant 0 : i32
    return %arg0, %c0_i32, %c0_i32_0, %c0_i32_1 : i32, i32, i32, i32
  }
  func.func @transform_1(%arg0: i32) -> (i32, i32, i32) {
    %c0_i32 = arith.constant 0 : i32
    %c0_i32_0 = arith.constant 0 : i32
    %c0_i32_1 = arith.constant 0 : i32
    return %arg0, %c0_i32, %c0_i32_0 : i32, i32, i32
  }
  func.func @transform_2(%arg0: i32) -> (i32, i32, i32) {
    %c0_i32 = arith.constant 0 : i32
    %c0_i32_0 = arith.constant 0 : i32
    %c0_i32_1 = arith.constant 0 : i32
    %c0_i32_2 = arith.constant 0 : i32
    return %c0_i32, %c0_i32_0, %c0_i32_1 : i32, i32, i32
  }
  func.func @transform_3(%arg0: i32) -> (i32, i32) {
    %c0_i32 = arith.constant 0 : i32
    %c0_i32_0 = arith.constant 0 : i32
    %c0_i32_1 = arith.constant 0 : i32
    return %c0_i32, %c0_i32_0 : i32, i32
  }
  func.func @transform_4(%arg0: i32) -> (i32, i32) {
    %c0_i32 = arith.constant 0 : i32
    %c0_i32_0 = arith.constant 0 : i32
    %c0_i32_1 = arith.constant 0 : i32
    return %c0_i32, %c0_i32_0 : i32, i32
  }
  func.func @transform_5(%arg0: i32) -> (i32, i32) {
    %c0_i32 = arith.constant 0 : i32
    %c0_i32_0 = arith.constant 0 : i32
    %c0_i32_1 = arith.constant 0 : i32
    return %c0_i32, %c0_i32_0 : i32, i32
  }
  func.func @transform_6(%arg0: i32) -> (i32, i32) {
    %c0_i32 = arith.constant 0 : i32
    %c0_i32_0 = arith.constant 0 : i32
    %c0_i32_1 = arith.constant 0 : i32
    return %c0_i32, %c0_i32_0 : i32, i32
  }
  func.func @transform_7(%arg0: i32) -> (i32, i32) {
    %c0_i32 = arith.constant 0 : i32
    %c0_i32_0 = arith.constant 0 : i32
    %c0_i32_1 = arith.constant 0 : i32
    return %c0_i32, %c0_i32_0 : i32, i32
  }
  func.func @transform_8(%arg0: i32) -> (i32, i32, i32) {
    %c0_i32 = arith.constant 0 : i32
    %c0_i32_0 = arith.constant 0 : i32
    %c0_i32_1 = arith.constant 0 : i32
    return %arg0, %c0_i32, %c0_i32_0 : i32, i32, i32
  }
}

</mosaic_0001>

<llo_original>
// kernel: light_featmap_to_latent.2
$region0: #{light_featmap_to_latent.2}
  #allocation0 [shape = 'u32[]', space=smem, size = 0x4, offset = 0x4, fixed_abs, tag = 'smem constant byte address 0x4 - core index']
  #allocation1 [shape = 'u32[144,128]{1,0:T(1,128)}', space=vmem, size = 0x12000, scoped, tag = 'internal scratch']
  %s0 = inlined_call_operand.vmem [shape: bf16[2,64,128], index: 0, kind: input, shape index: {}]
  %s1 = inlined_call_operand.vmem [shape: bf16[128,128], index: 1, kind: input, shape index: {}]
  %s2 = inlined_call_operand.vmem [shape: f32[1,128], index: 2, kind: input, shape index: {}]
  %s3 = inlined_call_operand.vmem [shape: f32[1,128], index: 3, kind: input, shape index: {}]
  %s4 = inlined_call_operand.vmem [shape: f32[2,64,128], index: 4, kind: output, shape index: {}]
  %s5 = sld [smem:[#allocation0]]
  $region49: #{light_featmap_to_latent.2} parent=0
    _
  %s7 = ssub.s32 1, %s5
  %s8 = scalar_select 0, %s7, %s5
  loop: start=0, step=1, limit=4
  $region2: #{light_featmap_to_latent.2} parent=0 // loop_pre_header
    _
  $region3: #{light_featmap_to_latent.2} parent=0 // loop_header
    %s10 = sphi 0, %s14
    %p11 = scmp.ge.s32.totalorder %s10, 4
    %s17 = sphi 0, %s29
    %s18 = sphi 0, %s25
    %s19 = sphi 0, %s17
    %s20 = sphi 0, %s18
    %s21 = sphi 0, %s19
    %s22 = sphi 0, %s20
    %s34 = sphi 0, %s36
    %s37 = sphi 0, %s34
    %s38 = sphi 0, %s37
    %s54 = sphi 0, %s38
    %s58 = sphi 0, %s58
    %s60 = sphi 0, %s58
    %s61 = sphi 0, %s60
    %s75 = sphi 0, %s61
    %s79 = sphi 0, %s79
    %s81 = sphi 0, %s79
    %s82 = sphi 0, %s81
    %s96 = sphi 0, %s82
    %s100 = sphi 0, %s100
    %s102 = sphi 0, %s100
    %s103 = sphi 0, %s102
    %s117 = sphi 0, %s103
    %s125 = sphi 0, %s127
    %s128 = sphi 0, %s125
    %s129 = sphi 0, %s128
    %s145 = sphi 0, %s129
  $region4: #{light_featmap_to_latent.2} parent=0 // loop_header_branch
    %13 = sbr.rel (%p11) target = $region8
  $region5: #{light_featmap_to_latent.2} parent=0 // loop_body
    %s15 = ssub.s32 %s10, 1
    %s16 = ssub.s32 %s10, 2
    %s23 = sadd.s32 1, %s18
    %p24 = scmp.ge.s32.totalorder %s23, 1
    %s25 = scalar_select %p24, 0, %s23
    %s26 = sadd.s32 1, %s17
    %s27 = scalar_select %p24, %s26, %s17
    %p28 = scmp.ge.s32.totalorder %s27, 2
    %s29 = scalar_select %p28, 0, %s27
    %s30 = ssub.s32 %s17, %s29
    %s31 = ssub.s32 %s18, %s25
    %s32 = sor.u32 %s30, %s31
    %p33 = scmp.eq.s32.totalorder %s32, 0
    %s35 = sadd.s32 %s34, 1
    %s36 = scalar_select %p33, %s34, %s35
    %p39 = pneg %p33
    %p40 = scmp.eq.s32.totalorder %s10, 1
    %p41 = por %p39, %p40
    %p42 = scmp.ne.s32.totalorder %s34, %s37
    %p43 = scmp.eq.s32.totalorder %s10, 0
    %p44 = por %p42, %p43
    %p45 = scmp.ne.s32.totalorder %s34, %s37
    %p46 = scmp.eq.s32.totalorder %s15, 1
    %p47 = por %p45, %p46
    %p48 = scmp.ne.s32.totalorder %s37, %s38
    %p49 = scmp.eq.s32.totalorder %s15, 0
    %p50 = por %p48, %p49
    %p51 = scmp.ne.s32.totalorder %s37, %s38
    %p52 = scmp.eq.s32.totalorder %s16, 1
    %p53 = por %p51, %p52
    %p55 = scmp.ne.s32.totalorder %s38, %s54
    %p56 = scmp.eq.s32.totalorder %s16, 0
    %p57 = por %p55, %p56
    %s59 = sadd.s32 %s58, 1
    %p62 = scmp.eq.s32.totalorder %s10, 1
    %p63 = scmp.ne.s32.totalorder %s58, %s60
    %p64 = scmp.eq.s32.totalorder %s10, 0
    %p65 = por %p63, %p64
    %p66 = scmp.ne.s32.totalorder %s58, %s60
    %p67 = scmp.eq.s32.totalorder %s15, 1
    %p68 = por %p66, %p67
    %p69 = scmp.ne.s32.totalorder %s60, %s61
    %p70 = scmp.eq.s32.totalorder %s15, 0
    %p71 = por %p69, %p70
    %p72 = scmp.ne.s32.totalorder %s60, %s61
    %p73 = scmp.eq.s32.totalorder %s16, 1
    %p74 = por %p72, %p73
    %p76 = scmp.ne.s32.totalorder %s61, %s75
    %p77 = scmp.eq.s32.totalorder %s16, 0
    %p78 = por %p76, %p77
    %s80 = sadd.s32 %s79, 1
    %p83 = scmp.eq.s32.totalorder %s10, 1
    %p84 = scmp.ne.s32.totalorder %s79, %s81
    %p85 = scmp.eq.s32.totalorder %s10, 0
    %p86 = por %p84, %p85
    %p87 = scmp.ne.s32.totalorder %s79, %s81
    %p88 = scmp.eq.s32.totalorder %s15, 1
    %p89 = por %p87, %p88
    %p90 = scmp.ne.s32.totalorder %s81, %s82
    %p91 = scmp.eq.s32.totalorder %s15, 0
    %p92 = por %p90, %p91
    %p93 = scmp.ne.s32.totalorder %s81, %s82
    %p94 = scmp.eq.s32.totalorder %s16, 1
    %p95 = por %p93, %p94
    %p97 = scmp.ne.s32.totalorder %s82, %s96
    %p98 = scmp.eq.s32.totalorder %s16, 0
    %p99 = por %p97, %p98
    %s101 = sadd.s32 %s100, 1
    %p104 = scmp.eq.s32.totalorder %s10, 1
    %p105 = scmp.ne.s32.totalorder %s100, %s102
    %p106 = scmp.eq.s32.totalorder %s10, 0
    %p107 = por %p105, %p106
    %p108 = scmp.ne.s32.totalorder %s100, %s102
    %p109 = scmp.eq.s32.totalorder %s15, 1
    %p110 = por %p108, %p109
    %p111 = scmp.ne.s32.totalorder %s102, %s103
    %p112 = scmp.eq.s32.totalorder %s15, 0
    %p113 = por %p111, %p112
    %p114 = scmp.ne.s32.totalorder %s102, %s103
    %p115 = scmp.eq.s32.totalorder %s16, 1
    %p116 = por %p114, %p115
    %p118 = scmp.ne.s32.totalorder %s103, %s117
    %p119 = scmp.eq.s32.totalorder %s16, 0
    %p120 = por %p118, %p119
    %s121 = ssub.s32 %s17, %s29
    %s122 = ssub.s32 %s18, %s25
    %s123 = sor.u32 %s121, %s122
    %p124 = scmp.eq.s32.totalorder %s123, 0
    %s126 = sadd.s32 %s125, 1
    %s127 = scalar_select %p124, %s125, %s126
    %p130 = pneg %p124
    %p131 = scmp.eq.s32.totalorder %s10, 1
    %p132 = por %p130, %p131
    %p133 = scmp.ne.s32.totalorder %s125, %s128
    %p134 = scmp.eq.s32.totalorder %s10, 0
    %p135 = por %p133, %p134
    %p136 = scmp.ne.s32.totalorder %s125, %s128
    %p137 = scmp.eq.s32.totalorder %s15, 1
    %p138 = por %p136, %p137
    %p139 = scmp.ne.s32.totalorder %s128, %s129
    %p140 = scmp.eq.s32.totalorder %s15, 0
    %p141 = por %p139, %p140
    %p142 = scmp.ne.s32.totalorder %s128, %s129
    %p143 = scmp.eq.s32.totalorder %s16, 1
    %p144 = por %p142, %p143
    %p146 = scmp.ne.s32.totalorder %s129, %s145
    %p147 = scmp.eq.s32.totalorder %s16, 0
    %p148 = por %p146, %p147
    %p149 = scmp.le.s32.totalorder 1, %s10
    %p150 = scmp.lt.s32.totalorder %s10, 3
    %p151 = pnand %p149, %p150
    %p152 = pneg %p151
    // Predicated region
    $region9: #{light_featmap_to_latent.2} parent=5 // pred_check
      _
    $region10: #{light_featmap_to_latent.2} parent=5 // pred_check_branch
      %154 = sbr.rel (%p151) target = $region12
    $region11: #{light_featmap_to_latent.2} parent=5 // pred_region
      %s155 = ssub.s32 %s10, 1
      // Predicated region
      $region13: #{light_featmap_to_latent.2} parent=11 // pred_check
        %p156 = pneg %p71
      $region14: #{light_featmap_to_latent.2} parent=11 // pred_check_branch
        %158 = sbr.rel (%p156) target = $region16
      $region15: #{light_featmap_to_latent.2} parent=11 // pred_region
        _
      $region16: #{light_featmap_to_latent.2} parent=11 // pred_fallthru
        _
      // Predicated region
      $region17: #{light_featmap_to_latent.2} parent=11 // pred_check
        %p159 = pneg %p92
      $region18: #{light_featmap_to_latent.2} parent=11 // pred_check_branch
        %161 = sbr.rel (%p159) target = $region20
      $region19: #{light_featmap_to_latent.2} parent=11 // pred_region
        _
      $region20: #{light_featmap_to_latent.2} parent=11 // pred_fallthru
        _
      // Predicated region
      $region21: #{light_featmap_to_latent.2} parent=11 // pred_check
        %p162 = pneg %p113
      $region22: #{light_featmap_to_latent.2} parent=11 // pred_check_branch
        %164 = sbr.rel (%p162) target = $region24
      $region23: #{light_featmap_to_latent.2} parent=11 // pred_region
        _
      $region24: #{light_featmap_to_latent.2} parent=11 // pred_fallthru
        _
    $region12: #{light_featmap_to_latent.2} parent=5 // pred_fallthru
      _
    %p165 = scmp.lt.s32.totalorder %s10, 2
    // Predicated region
    $region25: #{light_featmap_to_latent.2} parent=5 // pred_check
      %p166 = pneg %p165
    $region26: #{light_featmap_to_latent.2} parent=5 // pred_check_branch
      %168 = sbr.rel (%p166) target = $region28
    $region27: #{light_featmap_to_latent.2} parent=5 // pred_region
      // Predicated region
      $region29: #{light_featmap_to_latent.2} parent=27 // pred_check
        %p169 = pneg %p44
      $region30: #{light_featmap_to_latent.2} parent=27 // pred_check_branch
        %171 = sbr.rel (%p169) target = $region32
      $region31: #{light_featmap_to_latent.2} parent=27 // pred_region
        %s172 = smul.u32 8, %s18
        %p173 = scmp.lt.s32.totalorder %s17, 1
        %s174 = scalar_select %p173, %s17, 1
        %p175 = scmp.lt.s32.totalorder %s172, 7
        %s176 = scalar_select %p175, %s172, 7
        %s177 = smul.addr %s174, 8
        %s178 = sadd.s32 %s176, %s177
        %s179 = smul.addr %s178, 4
        %s180 = scalar_lea.vmem %s0, %s179
        %s181 = smul.u32 8, %s18
      $region32: #{light_featmap_to_latent.2} parent=27 // pred_fallthru
        _
    $region28: #{light_featmap_to_latent.2} parent=5 // pred_fallthru
      _
    %p182 = scmp.le.s32.totalorder 1, %s10
    %p183 = scmp.lt.s32.totalorder %s10, 3
    %p184 = pnand %p182, %p183
    %p185 = pneg %p184
    // Predicated region
    $region33: #{light_featmap_to_latent.2} parent=5 // pred_check
      _
    $region34: #{light_featmap_to_latent.2} parent=5 // pred_check_branch
      %187 = sbr.rel (%p184) target = $region36
    $region35: #{light_featmap_to_latent.2} parent=5 // pred_region
      %s188 = ssub.s32 %s10, 1
      %s189 = smul.u32 8, %s20
      %p190 = scmp.lt.s32.totalorder %s19, 1
      %s191 = scalar_select %p190, %s19, 1
      %p192 = scmp.lt.s32.totalorder %s189, 7
      %s193 = scalar_select %p192, %s189, 7
      %s194 = smul.addr %s191, 8
      %s195 = sadd.s32 %s193, %s194
      %s196 = smul.addr %s195, 4
      %s197 = scalar_lea.vmem %s0, %s196
      %p198 = pneg %p50
      %p199 = pneg %p47
      %p200 = pneg %p71
      %p201 = pneg %p68
      %p202 = pneg %p92
      %p203 = pneg %p89
      %p204 = pneg %p113
      %p205 = pneg %p110
      %p206 = pneg %p141
      %p207 = pneg %p138
      %s208 = smul.u32 8, %s20
      %p209 = scmp.lt.s32.totalorder %s19, 1
      %s210 = scalar_select %p209, %s19, 1
      %p211 = scmp.lt.s32.totalorder %s208, 7
      %s212 = scalar_select %p211, %s208, 7
      %s213 = smul.addr %s210, 8
      %s214 = sadd.s32 %s212, %s213
      %s215 = smul.addr %s214, 8
      %s216 = scalar_lea.vmem %s4, %s215
      %s217 = smul.u32 8, %s20
      %p218 = scmp.lt.s32.totalorder %s19, 1
      %s219 = scalar_select %p218, %s19, 1
      %p220 = scmp.lt.s32.totalorder %s217, 7
      %s221 = scalar_select %p220, %s217, 7
      %s222 = smul.addr %s219, 8
      %s223 = sadd.s32 %s221, %s222
      %s224 = smul.addr %s223, 4
      %s225 = scalar_lea.vmem %s0, %s224
      %s226 = smul.u32 8, %s20
      %s227 = smul.u32 8, %s20
      %p228 = scmp.lt.s32.totalorder %s19, 1
      %s229 = scalar_select %p228, %s19, 1
      %p230 = scmp.lt.s32.totalorder %s227, 7
      %s231 = scalar_select %p230, %s227, 7
      %s232 = smul.addr %s229, 8
      %s233 = sadd.s32 %s231, %s232
      %s234 = smul.addr %s233, 8
      %s235 = scalar_lea.vmem %s4, %s234
      %s236 = smul.u32 8, %s20
      %v238 = vld [vmem:[%s225] sm:$0xf]
      %v239 = vld [vmem:[%s225 + $0x4] sm:$0xf]
      %v240 = vld [vmem:[%s225 + $0x8] sm:$0xf]
      %v241 = vld [vmem:[%s225 + $0xc] sm:$0xf]
      %v242 = vld [vmem:[%s225 + $0x10] sm:$0xf]
      %v243 = vld [vmem:[%s225 + $0x14] sm:$0xf]
      %v244 = vld [vmem:[%s225 + $0x18] sm:$0xf]
      %v245 = vld [vmem:[%s225 + $0x1c] sm:$0xf]
      %v246 = vld [vmem:[%s1] sm:$0xf]
      %v247 = vld [vmem:[%s1 + $0x4] sm:$0xf]
      %v248 = vld [vmem:[%s1 + $0x8] sm:$0xf]
      %v249 = vld [vmem:[%s1 + $0xc] sm:$0xf]
      %v250 = vld [vmem:[%s1 + $0x10] sm:$0xf]
      %v251 = vld [vmem:[%s1 + $0x14] sm:$0xf]
      %v252 = vld [vmem:[%s1 + $0x18] sm:$0xf]
      %v253 = vld [vmem:[%s1 + $0x1c] sm:$0xf]
      %v254 = vld [vmem:[%s1 + $0x20] sm:$0xf]
      %v255 = vld [vmem:[%s1 + $0x24] sm:$0xf]
      %v256 = vld [vmem:[%s1 + $0x28] sm:$0xf]
      %v257 = vld [vmem:[%s1 + $0x2c] sm:$0xf]
      %v258 = vld [vmem:[%s1 + $0x30] sm:$0xf]
      %v259 = vld [vmem:[%s1 + $0x34] sm:$0xf]
      %v260 = vld [vmem:[%s1 + $0x38] sm:$0xf]
      %v261 = vld [vmem:[%s1 + $0x3c] sm:$0xf]
      %v270 = vunpack.c.l.b16 %v238
      %v271 = vunpack.c.l.b16 %v239
      %v272 = vunpack.c.l.b16 %v240
      %v273 = vunpack.c.l.b16 %v241
      %v274 = vunpack.c.l.b16 %v242
      %v275 = vunpack.c.l.b16 %v243
      %v276 = vunpack.c.l.b16 %v244
      %v277 = vunpack.c.l.b16 %v245
      %v278 = vpack.c.b16 %v271, %v270
      %v279 = vpack.c.b16 %v273, %v272
      %v280 = vpack.c.b16 %v275, %v274
      %v281 = vpack.c.b16 %v277, %v276
      %v302 = vunpack.c.l.b16 %v246
      %v303 = vunpack.c.l.b16 %v247
      %v304 = vunpack.c.l.b16 %v248
      %v305 = vunpack.c.l.b16 %v249
      %v306 = vunpack.c.l.b16 %v250
      %v307 = vunpack.c.l.b16 %v251
      %v308 = vunpack.c.l.b16 %v252
      %v309 = vunpack.c.l.b16 %v253
      %v310 = vunpack.c.l.b16 %v254
      %v311 = vunpack.c.l.b16 %v255
      %v312 = vunpack.c.l.b16 %v256
      %v313 = vunpack.c.l.b16 %v257
      %v314 = vunpack.c.l.b16 %v258
      %v315 = vunpack.c.l.b16 %v259
      %v316 = vunpack.c.l.b16 %v260
      %v317 = vunpack.c.l.b16 %v261
      %v318 = vpack.c.b16 %v303, %v302
      %v319 = vpack.c.b16 %v305, %v304
      %v320 = vpack.c.b16 %v307, %v306
      %v321 = vpack.c.b16 %v309, %v308
      %v322 = vpack.c.b16 %v311, %v310
      %v323 = vpack.c.b16 %v313, %v312
      %v324 = vpack.c.b16 %v315, %v314
      %v325 = vpack.c.b16 %v317, %v316
      %334 = vmatprep.subr.bf16.mxu0 0
      %335 = vmatpush1.bf16.msra.mxu0 %v325
      %336 = vmatprep.subr.bf16.mxu0 0
      %337 = vmatpush1.bf16.msra.mxu0 %v324
      %338 = vmatprep.subr.bf16.mxu0 0
      %339 = vmatpush1.bf16.msra.mxu0 %v323
      %340 = vmatprep.subr.bf16.mxu0 0
      %341 = vmatpush1.bf16.msra.mxu0 %v322
      %342 = vmatprep.subr.bf16.mxu0 0
      %343 = vmatpush1.bf16.msra.mxu0 %v321
      %344 = vmatprep.subr.bf16.mxu0 0
      %345 = vmatpush1.bf16.msra.mxu0 %v320
      %346 = vmatprep.subr.bf16.mxu0 0
      %347 = vmatpush1.bf16.msra.mxu0 %v319
      %348 = vmatprep.subr.bf16.mxu0 0
      %349 = vmatpush1.bf16.msra.mxu0 %v318
      %350 = vmatprep.subr.bf16.mxu0 0
      %351 = vmatpush2.bf16.msra.mxu0 0
      %352 = vmatprep.subr.bf16.mxu0 0
      %353 = vmatpush2.bf16.msra.mxu0 0
      %354 = vmatprep.subr.bf16.mxu0 0
      %355 = vmatpush2.bf16.msra.mxu0 0
      %356 = vmatprep.subr.bf16.mxu0 0
      %357 = vmatpush2.bf16.msra.mxu0 0
      %358 = vmatprep.subr.bf16.mxu0 0
      %359 = vmatpush2.bf16.msra.mxu0 0
      %360 = vmatprep.subr.bf16.mxu0 0
      %361 = vmatpush2.bf16.msra.mxu0 0
      %362 = vmatprep.subr.bf16.mxu0 0
      %363 = vmatpush2.bf16.msra.mxu0 0
      %364 = vmatprep.subr.bf16.mxu0 0
      %365 = vmatpush2.bf16.msra.mxu0 0
      %366 = vmatprep.mubr.bf16.mxu0 0
      %367 = vmatmul.mubr.bf16.gmra.mxu0 %v278
      %v368 = vpop.f32.mrf.mxu0
      %v369 = vadd.f32 0.0, %v368
      %v370 = vpop.f32.mrf.mxu0
      %v371 = vpop.f32.mrf.mxu0
      %v372 = vadd.f32 0.0, %v371
      %v373 = vpop.f32.mrf.mxu0
      %374 = vmatprep.mubr.bf16.mxu0 0
      %375 = vmatmul.mubr.bf16.gmra.mxu0 %v279
      %v376 = vpop.f32.mrf.mxu0
      %v377 = vadd.f32 0.0, %v376
      %v378 = vpop.f32.mrf.mxu0
      %v379 = vpop.f32.mrf.mxu0
      %v380 = vadd.f32 0.0, %v379
      %v381 = vpop.f32.mrf.mxu0
      %382 = vmatprep.mubr.bf16.mxu0 0
      %383 = vmatmul.mubr.bf16.gmra.mxu0 %v280
      %v384 = vpop.f32.mrf.mxu0
      %v385 = vadd.f32 0.0, %v384
      %v386 = vpop.f32.mrf.mxu0
      %v387 = vpop.f32.mrf.mxu0
      %v388 = vadd.f32 0.0, %v387
      %v389 = vpop.f32.mrf.mxu0
      %390 = vmatprep.mubr.bf16.mxu0 0
      %391 = vmatmul.mubr.bf16.gmra.mxu0 %v281
      %v392 = vpop.f32.mrf.mxu0
      %v393 = vadd.f32 0.0, %v392
      %v394 = vpop.f32.mrf.mxu0
      %v395 = vpop.f32.mrf.mxu0
      %v396 = vadd.f32 0.0, %v395
      %v397 = vpop.f32.mrf.mxu0
      %398 = vdwg.mxu0
      %v399 = vld [vmem:[%s2] sm:$0x1]
      %v401 = vlaneseq
      %v402 = vshrl.u32 %v401, 7
      %v403 = vsub.s32 0, %v402
      %v404 = vrot.slane %v399, %v403
      %v406 = vmul.f32 %v369, %v404
      %v407 = vmul.f32 %v372, %v404
      %v408 = vmul.f32 %v377, %v404
      %v409 = vmul.f32 %v380, %v404
      %v410 = vmul.f32 %v385, %v404
      %v411 = vmul.f32 %v388, %v404
      %v412 = vmul.f32 %v393, %v404
      %v413 = vmul.f32 %v396, %v404
      %v414 = vld [vmem:[%s3] sm:$0x1]
      %v416 = vlaneseq
      %v417 = vshrl.u32 %v416, 7
      %v418 = vsub.s32 0, %v417
      %v419 = vrot.slane %v414, %v418
      %v421 = vadd.f32 %v406, %v419
      %v422 = vadd.f32 %v407, %v419
      %v423 = vadd.f32 %v408, %v419
      %v424 = vadd.f32 %v409, %v419
      %v425 = vadd.f32 %v410, %v419
      %v426 = vadd.f32 %v411, %v419
      %v427 = vadd.f32 %v412, %v419
      %v428 = vadd.f32 %v413, %v419
      %v429 = vmin.f32 %v421, 20.0
      %v430 = vmin.f32 %v422, 20.0
      %v431 = vmin.f32 %v423, 20.0
      %v432 = vmin.f32 %v424, 20.0
      %v433 = vmin.f32 %v425, 20.0
      %v434 = vmin.f32 %v426, 20.0
      %v435 = vmin.f32 %v427, 20.0
      %v436 = vmin.f32 %v428, 20.0
      %v437 = vmul.f32 %v429, 1.442695
      %v438 = vpow.pop %v437
      %v439 = vmul.f32 %v430, 1.442695
      %v440 = vpow.pop %v439
      %v441 = vmul.f32 %v431, 1.442695
      %v442 = vpow.pop %v441
      %v443 = vmul.f32 %v432, 1.442695
      %v444 = vpow.pop %v443
      %v445 = vmul.f32 %v433, 1.442695
      %v446 = vpow.pop %v445
      %v447 = vmul.f32 %v434, 1.442695
      %v448 = vpow.pop %v447
      %v449 = vmul.f32 %v435, 1.442695
      %v450 = vpow.pop %v449
      %v451 = vmul.f32 %v436, 1.442695
      %v452 = vpow.pop %v451
      %v453 = vadd.f32 %v438, 2.0
      %v454 = vadd.f32 %v440, 2.0
      %v455 = vadd.f32 %v442, 2.0
      %v456 = vadd.f32 %v444, 2.0
      %v457 = vadd.f32 %v446, 2.0
      %v458 = vadd.f32 %v448, 2.0
      %v459 = vadd.f32 %v450, 2.0
      %v460 = vadd.f32 %v452, 2.0
      %v461 = vmul.f32 %v438, %v453
      %v462 = vmul.f32 %v440, %v454
      %v463 = vmul.f32 %v442, %v455
      %v464 = vmul.f32 %v444, %v456
      %v465 = vmul.f32 %v446, %v457
      %v466 = vmul.f32 %v448, %v458
      %v467 = vmul.f32 %v450, %v459
      %v468 = vmul.f32 %v452, %v460
      %v469 = vmul.f32 %v421, %v461
      %v470 = vmul.f32 %v422, %v462
      %v471 = vmul.f32 %v423, %v463
      %v472 = vmul.f32 %v424, %v464
      %v473 = vmul.f32 %v425, %v465
      %v474 = vmul.f32 %v426, %v466
      %v475 = vmul.f32 %v427, %v467
      %v476 = vmul.f32 %v428, %v468
      %v477 = vadd.f32 %v461, 2.0
      %v478 = vadd.f32 %v462, 2.0
      %v479 = vadd.f32 %v463, 2.0
      %v480 = vadd.f32 %v464, 2.0
      %v481 = vadd.f32 %v465, 2.0
      %v482 = vadd.f32 %v466, 2.0
      %v483 = vadd.f32 %v467, 2.0
      %v484 = vadd.f32 %v468, 2.0
      %v485 = vrcp.pop %v477
      %v486 = vrcp.pop %v478
      %v487 = vrcp.pop %v479
      %v488 = vrcp.pop %v480
      %v489 = vrcp.pop %v481
      %v490 = vrcp.pop %v482
      %v491 = vrcp.pop %v483
      %v492 = vrcp.pop %v484
      %v493 = vmul.f32 %v469, %v485
      %v494 = vmul.f32 %v470, %v486
      %v495 = vmul.f32 %v471, %v487
      %v496 = vmul.f32 %v472, %v488
      %v497 = vmul.f32 %v473, %v489
      %v498 = vmul.f32 %v474, %v490
      %v499 = vmul.f32 %v475, %v491
      %v500 = vmul.f32 %v476, %v492
      %vm501 = vcmp.gt.f32.partialorder %v421, 20.0
      %vm502 = vcmp.gt.f32.partialorder %v422, 20.0
      %vm503 = vcmp.gt.f32.partialorder %v423, 20.0
      %vm504 = vcmp.gt.f32.partialorder %v424, 20.0
      %vm505 = vcmp.gt.f32.partialorder %v425, 20.0
      %vm506 = vcmp.gt.f32.partialorder %v426, 20.0
      %vm507 = vcmp.gt.f32.partialorder %v427, 20.0
      %vm508 = vcmp.gt.f32.partialorder %v428, 20.0
      %v509 = vsel %vm501, %v421, %v493
      %v510 = vsel %vm502, %v422, %v494
      %v511 = vsel %vm503, %v423, %v495
      %v512 = vsel %vm504, %v424, %v496
      %v513 = vsel %vm505, %v425, %v497
      %v514 = vsel %vm506, %v426, %v498
      %v515 = vsel %vm507, %v427, %v499
      %v516 = vsel %vm508, %v428, %v500
      %517 = vst [vmem:[%s235] sm:$0xff] %v509
      %518 = vst [vmem:[%s235 + $0x8] sm:$0xff] %v510
      %519 = vst [vmem:[%s235 + $0x10] sm:$0xff] %v511
      %520 = vst [vmem:[%s235 + $0x18] sm:$0xff] %v512
      %521 = vst [vmem:[%s235 + $0x20] sm:$0xff] %v513
      %522 = vst [vmem:[%s235 + $0x28] sm:$0xff] %v514
      %523 = vst [vmem:[%s235 + $0x30] sm:$0xff] %v515
      %524 = vst [vmem:[%s235 + $0x38] sm:$0xff] %v516
      %s525 = smul.u32 8, %s20
      %p526 = scmp.lt.s32.totalorder %s19, 1
      %s527 = scalar_select %p526, %s19, 1
      %p528 = scmp.lt.s32.totalorder %s525, 7
      %s529 = scalar_select %p528, %s525, 7
      %s530 = smul.addr %s527, 8
      %s531 = sadd.s32 %s529, %s530
      %s532 = smul.addr %s531, 8
      %s533 = scalar_lea.vmem %s4, %s532
      // Predicated region
      $region37: #{light_featmap_to_latent.2} parent=35 // pred_check
        %p534 = pneg %p138
      $region38: #{light_featmap_to_latent.2} parent=35 // pred_check_branch
        %536 = sbr.rel (%p534) target = $region40
      $region39: #{light_featmap_to_latent.2} parent=35 // pred_region
        %s537 = smul.u32 8, %s20
      $region40: #{light_featmap_to_latent.2} parent=35 // pred_fallthru
        _
    $region36: #{light_featmap_to_latent.2} parent=5 // pred_fallthru
      _
    %p538 = scmp.le.s32.totalorder 2, %s10
    // Predicated region
    $region41: #{light_featmap_to_latent.2} parent=5 // pred_check
      %p539 = pneg %p538
    $region42: #{light_featmap_to_latent.2} parent=5 // pred_check_branch
      %541 = sbr.rel (%p539) target = $region44
    $region43: #{light_featmap_to_latent.2} parent=5 // pred_region
      %s542 = ssub.s32 %s10, 2
      // Predicated region
      $region45: #{light_featmap_to_latent.2} parent=43 // pred_check
        %p543 = pneg %p144
      $region46: #{light_featmap_to_latent.2} parent=43 // pred_check_branch
        %545 = sbr.rel (%p543) target = $region48
      $region47: #{light_featmap_to_latent.2} parent=43 // pred_region
        %s546 = smul.u32 8, %s22
        %p547 = scmp.lt.s32.totalorder %s21, 1
        %s548 = scalar_select %p547, %s21, 1
        %p549 = scmp.lt.s32.totalorder %s546, 7
        %s550 = scalar_select %p549, %s546, 7
        %s551 = smul.addr %s548, 8
        %s552 = sadd.s32 %s550, %s551
        %s553 = smul.addr %s552, 8
        %s554 = scalar_lea.vmem %s4, %s553
      $region48: #{light_featmap_to_latent.2} parent=43 // pred_fallthru
        _
    $region44: #{light_featmap_to_latent.2} parent=5 // pred_fallthru
      _
  $region6: #{light_featmap_to_latent.2} parent=0 // loop_footer
    %s14 = sadd.s32 1, %s10
  $region7: #{light_featmap_to_latent.2} parent=0 // loop_footer_branch
    %9 = sbr.rel target = $region3
  $region8: #{light_featmap_to_latent.2} parent=0 // loop_exit
    _

// kernel: light_featmap_to_latent.3
$region0: #{light_featmap_to_latent.3}
  #allocation0 [shape = 'u32[]', space=smem, size = 0x4, offset = 0x4, fixed_abs, tag = 'smem constant byte address 0x4 - core index']
  #allocation1 [shape = 'u32[144,128]{1,0:T(1,128)}', space=vmem, size = 0x12000, scoped, tag = 'internal scratch']
  %s0 = inlined_call_operand.vmem [shape: f32[2,10,10,128], index: 0, kind: input, shape index: {}]
  %s1 = inlined_call_operand.vmem [shape: bf16[2,64,128], index: 1, kind: input, shape index: {}]
  %s2 = inlined_call_operand.vmem [shape: bf16[9,128,128], index: 2, kind: input, shape index: {}]
  %s3 = inlined_call_operand.vmem [shape: bf16[128,128], index: 3, kind: input, shape index: {}]
  %s4 = inlined_call_operand.vmem [shape: f32[1,128], index: 4, kind: input, shape index: {}]
  %s5 = inlined_call_operand.vmem [shape: f32[1,128], index: 5, kind: input, shape index: {}]
  %s6 = inlined_call_operand.vmem [shape: f32[128,128], index: 6, kind: input, shape index: {}]
  %s7 = inlined_call_operand.vmem [shape: f32[1,128], index: 7, kind: input, shape index: {}]
  %s8 = inlined_call_operand.hbm [shape: f32[2,1,128], index: 8, kind: output, shape index: {}]
  %s9 = sld [smem:[#allocation0]]
  $region65: #{light_featmap_to_latent.3} parent=0
    _
  %s11 = ssub.s32 1, %s9
  %s12 = scalar_select 0, %s11, %s9
  $region1: #{light_featmap_to_latent.3} parent=0
    #allocation2 [shape = 'u8[1024]{0}', space=vmem, size = 0x400, scoped, tag = 'output window, operand 0']
    #allocation3 [shape = 's32[2]{0}', space=sflag, size = 0x8, scoped, tag = 'scoped memory for light_featmap_to_latent.3']
    %13 = vsyncpa [#allocation3], 0
    %s14 = scalar_lea.sflag [#allocation3], 1
    %15 = vsyncpa %s14, 0
    loop: start=0, step=1, limit=4
    $region2: #{light_featmap_to_latent.3} parent=1 // loop_pre_header
      _
    $region3: #{light_featmap_to_latent.3} parent=1 // loop_header
      %s17 = sphi 0, %s21
      %p18 = scmp.ge.s32.totalorder %s17, 4
      %s27 = sphi 0, %s29
      %s30 = sphi 0, %s27
      %s31 = sphi 0, %s30
      %s47 = sphi 0, %s31
      %s53 = sphi 0, %s55
      %s56 = sphi 0, %s53
      %s57 = sphi 0, %s56
      %s73 = sphi 0, %s57
      %s77 = sphi 0, %s77
      %s79 = sphi 0, %s77
      %s80 = sphi 0, %s79
      %s94 = sphi 0, %s80
      %s98 = sphi 0, %s98
      %s100 = sphi 0, %s98
      %s101 = sphi 0, %s100
      %s115 = sphi 0, %s101
      %s119 = sphi 0, %s119
      %s121 = sphi 0, %s119
      %s122 = sphi 0, %s121
      %s136 = sphi 0, %s122
      %s140 = sphi 0, %s140
      %s142 = sphi 0, %s140
      %s143 = sphi 0, %s142
      %s157 = sphi 0, %s143
      %s161 = sphi 0, %s161
      %s163 = sphi 0, %s161
      %s164 = sphi 0, %s163
      %s178 = sphi 0, %s164
      %s182 = sphi 0, %s182
      %s184 = sphi 0, %s182
      %s185 = sphi 0, %s184
      %s199 = sphi 0, %s185
      %s205 = sphi 0, %s207
      %s208 = sphi 0, %s205
      %s209 = sphi 0, %s208
      %s225 = sphi 0, %s209
    $region4: #{light_featmap_to_latent.3} parent=1 // loop_header_branch
      %20 = sbr.rel (%p18) target = $region8
    $region5: #{light_featmap_to_latent.3} parent=1 // loop_body
      %s22 = ssub.s32 %s17, 1
      %s23 = ssub.s32 %s17, 2
      %s24 = sadd.s32 %s17, 1
      %s25 = ssub.s32 %s17, %s24
      %p26 = scmp.eq.s32.totalorder %s25, 0
      %s28 = sadd.s32 %s27, 1
      %s29 = scalar_select %p26, %s27, %s28
      %p32 = pneg %p26
      %p33 = scmp.eq.s32.totalorder %s17, 1
      %p34 = por %p32, %p33
      %p35 = scmp.ne.s32.totalorder %s27, %s30
      %p36 = scmp.eq.s32.totalorder %s17, 0
      %p37 = por %p35, %p36
      %p38 = scmp.ne.s32.totalorder %s27, %s30
      %p39 = scmp.eq.s32.totalorder %s22, 1
      %p40 = por %p38, %p39
      %p41 = scmp.ne.s32.totalorder %s30, %s31
      %p42 = scmp.eq.s32.totalorder %s22, 0
      %p43 = por %p41, %p42
      %p44 = scmp.ne.s32.totalorder %s30, %s31
      %p45 = scmp.eq.s32.totalorder %s23, 1
      %p46 = por %p44, %p45
      %p48 = scmp.ne.s32.totalorder %s31, %s47
      %p49 = scmp.eq.s32.totalorder %s23, 0
      %p50 = por %p48, %p49
      %s51 = ssub.s32 %s17, %s24
      %p52 = scmp.eq.s32.totalorder %s51, 0
      %s54 = sadd.s32 %s53, 1
      %s55 = scalar_select %p52, %s53, %s54
      %p58 = pneg %p52
      %p59 = scmp.eq.s32.totalorder %s17, 1
      %p60 = por %p58, %p59
      %p61 = scmp.ne.s32.totalorder %s53, %s56
      %p62 = scmp.eq.s32.totalorder %s17, 0
      %p63 = por %p61, %p62
      %p64 = scmp.ne.s32.totalorder %s53, %s56
      %p65 = scmp.eq.s32.totalorder %s22, 1
      %p66 = por %p64, %p65
      %p67 = scmp.ne.s32.totalorder %s56, %s57
      %p68 = scmp.eq.s32.totalorder %s22, 0
      %p69 = por %p67, %p68
      %p70 = scmp.ne.s32.totalorder %s56, %s57
      %p71 = scmp.eq.s32.totalorder %s23, 1
      %p72 = por %p70, %p71
      %p74 = scmp.ne.s32.totalorder %s57, %s73
      %p75 = scmp.eq.s32.totalorder %s23, 0
      %p76 = por %p74, %p75
      %s78 = sadd.s32 %s77, 1
      %p81 = scmp.eq.s32.totalorder %s17, 1
      %p82 = scmp.ne.s32.totalorder %s77, %s79
      %p83 = scmp.eq.s32.totalorder %s17, 0
      %p84 = por %p82, %p83
      %p85 = scmp.ne.s32.totalorder %s77, %s79
      %p86 = scmp.eq.s32.totalorder %s22, 1
      %p87 = por %p85, %p86
      %p88 = scmp.ne.s32.totalorder %s79, %s80
      %p89 = scmp.eq.s32.totalorder %s22, 0
      %p90 = por %p88, %p89
      %p91 = scmp.ne.s32.totalorder %s79, %s80
      %p92 = scmp.eq.s32.totalorder %s23, 1
      %p93 = por %p91, %p92
      %p95 = scmp.ne.s32.totalorder %s80, %s94
      %p96 = scmp.eq.s32.totalorder %s23, 0
      %p97 = por %p95, %p96
      %s99 = sadd.s32 %s98, 1
      %p102 = scmp.eq.s32.totalorder %s17, 1
      %p103 = scmp.ne.s32.totalorder %s98, %s100
      %p104 = scmp.eq.s32.totalorder %s17, 0
      %p105 = por %p103, %p104
      %p106 = scmp.ne.s32.totalorder %s98, %s100
      %p107 = scmp.eq.s32.totalorder %s22, 1
      %p108 = por %p106, %p107
      %p109 = scmp.ne.s32.totalorder %s100, %s101
      %p110 = scmp.eq.s32.totalorder %s22, 0
      %p111 = por %p109, %p110
      %p112 = scmp.ne.s32.totalorder %s100, %s101
      %p113 = scmp.eq.s32.totalorder %s23, 1
      %p114 = por %p112, %p113
      %p116 = scmp.ne.s32.totalorder %s101, %s115
      %p117 = scmp.eq.s32.totalorder %s23, 0
      %p118 = por %p116, %p117
      %s120 = sadd.s32 %s119, 1
      %p123 = scmp.eq.s32.totalorder %s17, 1
      %p124 = scmp.ne.s32.totalorder %s119, %s121
      %p125 = scmp.eq.s32.totalorder %s17, 0
      %p126 = por %p124, %p125
      %p127 = scmp.ne.s32.totalorder %s119, %s121
      %p128 = scmp.eq.s32.totalorder %s22, 1
      %p129 = por %p127, %p128
      %p130 = scmp.ne.s32.totalorder %s121, %s122
      %p131 = scmp.eq.s32.totalorder %s22, 0
      %p132 = por %p130, %p131
      %p133 = scmp.ne.s32.totalorder %s121, %s122
      %p134 = scmp.eq.s32.totalorder %s23, 1
      %p135 = por %p133, %p134
      %p137 = scmp.ne.s32.totalorder %s122, %s136
      %p138 = scmp.eq.s32.totalorder %s23, 0
      %p139 = por %p137, %p138
      %s141 = sadd.s32 %s140, 1
      %p144 = scmp.eq.s32.totalorder %s17, 1
      %p145 = scmp.ne.s32.totalorder %s140, %s142
      %p146 = scmp.eq.s32.totalorder %s17, 0
      %p147 = por %p145, %p146
      %p148 = scmp.ne.s32.totalorder %s140, %s142
      %p149 = scmp.eq.s32.totalorder %s22, 1
      %p150 = por %p148, %p149
      %p151 = scmp.ne.s32.totalorder %s142, %s143
      %p152 = scmp.eq.s32.totalorder %s22, 0
      %p153 = por %p151, %p152
      %p154 = scmp.ne.s32.totalorder %s142, %s143
      %p155 = scmp.eq.s32.totalorder %s23, 1
      %p156 = por %p154, %p155
      %p158 = scmp.ne.s32.totalorder %s143, %s157
      %p159 = scmp.eq.s32.totalorder %s23, 0
      %p160 = por %p158, %p159
      %s162 = sadd.s32 %s161, 1
      %p165 = scmp.eq.s32.totalorder %s17, 1
      %p166 = scmp.ne.s32.totalorder %s161, %s163
      %p167 = scmp.eq.s32.totalorder %s17, 0
      %p168 = por %p166, %p167
      %p169 = scmp.ne.s32.totalorder %s161, %s163
      %p170 = scmp.eq.s32.totalorder %s22, 1
      %p171 = por %p169, %p170
      %p172 = scmp.ne.s32.totalorder %s163, %s164
      %p173 = scmp.eq.s32.totalorder %s22, 0
      %p174 = por %p172, %p173
      %p175 = scmp.ne.s32.totalorder %s163, %s164
      %p176 = scmp.eq.s32.totalorder %s23, 1
      %p177 = por %p175, %p176
      %p179 = scmp.ne.s32.totalorder %s164, %s178
      %p180 = scmp.eq.s32.totalorder %s23, 0
      %p181 = por %p179, %p180
      %s183 = sadd.s32 %s182, 1
      %p186 = scmp.eq.s32.totalorder %s17, 1
      %p187 = scmp.ne.s32.totalorder %s182, %s184
      %p188 = scmp.eq.s32.totalorder %s17, 0
      %p189 = por %p187, %p188
      %p190 = scmp.ne.s32.totalorder %s182, %s184
      %p191 = scmp.eq.s32.totalorder %s22, 1
      %p192 = por %p190, %p191
      %p193 = scmp.ne.s32.totalorder %s184, %s185
      %p194 = scmp.eq.s32.totalorder %s22, 0
      %p195 = por %p193, %p194
      %p196 = scmp.ne.s32.totalorder %s184, %s185
      %p197 = scmp.eq.s32.totalorder %s23, 1
      %p198 = por %p196, %p197
      %p200 = scmp.ne.s32.totalorder %s185, %s199
      %p201 = scmp.eq.s32.totalorder %s23, 0
      %p202 = por %p200, %p201
      %s203 = ssub.s32 %s17, %s24
      %p204 = scmp.eq.s32.totalorder %s203, 0
      %s206 = sadd.s32 %s205, 1
      %s207 = scalar_select %p204, %s205, %s206
      %p210 = pneg %p204
      %p211 = scmp.eq.s32.totalorder %s17, 1
      %p212 = por %p210, %p211
      %p213 = scmp.ne.s32.totalorder %s205, %s208
      %p214 = scmp.eq.s32.totalorder %s17, 0
      %p215 = por %p213, %p214
      %p216 = scmp.ne.s32.totalorder %s205, %s208
      %p217 = scmp.eq.s32.totalorder %s22, 1
      %p218 = por %p216, %p217
      %p219 = scmp.ne.s32.totalorder %s208, %s209
      %p220 = scmp.eq.s32.totalorder %s22, 0
      %p221 = por %p219, %p220
      %p222 = scmp.ne.s32.totalorder %s208, %s209
      %p223 = scmp.eq.s32.totalorder %s23, 1
      %p224 = por %p222, %p223
      %p226 = scmp.ne.s32.totalorder %s209, %s225
      %p227 = scmp.eq.s32.totalorder %s23, 0
      %p228 = por %p226, %p227
      %p229 = scmp.le.s32.totalorder 1, %s17
      %p230 = scmp.lt.s32.totalorder %s17, 3
      %p231 = pnand %p229, %p230
      %p232 = pneg %p231
      // Predicated region
      $region9: #{light_featmap_to_latent.3} parent=5 // pred_check
        _
      $region10: #{light_featmap_to_latent.3} parent=5 // pred_check_branch
        %234 = sbr.rel (%p231) target = $region12
      $region11: #{light_featmap_to_latent.3} parent=5 // pred_region
        %s235 = ssub.s32 %s17, 1
        // Predicated region
        $region13: #{light_featmap_to_latent.3} parent=11 // pred_check
          %p236 = pneg %p90
        $region14: #{light_featmap_to_latent.3} parent=11 // pred_check_branch
          %238 = sbr.rel (%p236) target = $region16
        $region15: #{light_featmap_to_latent.3} parent=11 // pred_region
          _
        $region16: #{light_featmap_to_latent.3} parent=11 // pred_fallthru
          _
        // Predicated region
        $region17: #{light_featmap_to_latent.3} parent=11 // pred_check
          %p239 = pneg %p111
        $region18: #{light_featmap_to_latent.3} parent=11 // pred_check_branch
          %241 = sbr.rel (%p239) target = $region20
        $region19: #{light_featmap_to_latent.3} parent=11 // pred_region
          _
        $region20: #{light_featmap_to_latent.3} parent=11 // pred_fallthru
          _
        // Predicated region
        $region21: #{light_featmap_to_latent.3} parent=11 // pred_check
          %p242 = pneg %p132
        $region22: #{light_featmap_to_latent.3} parent=11 // pred_check_branch
          %244 = sbr.rel (%p242) target = $region24
        $region23: #{light_featmap_to_latent.3} parent=11 // pred_region
          _
        $region24: #{light_featmap_to_latent.3} parent=11 // pred_fallthru
          _
        // Predicated region
        $region25: #{light_featmap_to_latent.3} parent=11 // pred_check
          %p245 = pneg %p153
        $region26: #{light_featmap_to_latent.3} parent=11 // pred_check_branch
          %247 = sbr.rel (%p245) target = $region28
        $region27: #{light_featmap_to_latent.3} parent=11 // pred_region
          _
        $region28: #{light_featmap_to_latent.3} parent=11 // pred_fallthru
          _
        // Predicated region
        $region29: #{light_featmap_to_latent.3} parent=11 // pred_check
          %p248 = pneg %p174
        $region30: #{light_featmap_to_latent.3} parent=11 // pred_check_branch
          %250 = sbr.rel (%p248) target = $region32
        $region31: #{light_featmap_to_latent.3} parent=11 // pred_region
          _
        $region32: #{light_featmap_to_latent.3} parent=11 // pred_fallthru
          _
        // Predicated region
        $region33: #{light_featmap_to_latent.3} parent=11 // pred_check
          %p251 = pneg %p195
        $region34: #{light_featmap_to_latent.3} parent=11 // pred_check_branch
          %253 = sbr.rel (%p251) target = $region36
        $region35: #{light_featmap_to_latent.3} parent=11 // pred_region
          _
        $region36: #{light_featmap_to_latent.3} parent=11 // pred_fallthru
          _
      $region12: #{light_featmap_to_latent.3} parent=5 // pred_fallthru
        _
      %p254 = scmp.lt.s32.totalorder %s17, 2
      // Predicated region
      $region37: #{light_featmap_to_latent.3} parent=5 // pred_check
        %p255 = pneg %p254
      $region38: #{light_featmap_to_latent.3} parent=5 // pred_check_branch
        %257 = sbr.rel (%p255) target = $region40
      $region39: #{light_featmap_to_latent.3} parent=5 // pred_region
        // Predicated region
        $region41: #{light_featmap_to_latent.3} parent=39 // pred_check
          %p258 = pneg %p37
        $region42: #{light_featmap_to_latent.3} parent=39 // pred_check_branch
          %260 = sbr.rel (%p258) target = $region44
        $region43: #{light_featmap_to_latent.3} parent=39 // pred_region
          %p261 = scmp.lt.s32.totalorder %s17, 1
          %s262 = scalar_select %p261, %s17, 1
          %s263 = smul.addr %s262, 20
          %s264 = smul.addr %s263, 8
          %s265 = scalar_lea.vmem %s0, %s264
        $region44: #{light_featmap_to_latent.3} parent=39 // pred_fallthru
          _
        // Predicated region
        $region45: #{light_featmap_to_latent.3} parent=39 // pred_check
          %p266 = pneg %p63
        $region46: #{light_featmap_to_latent.3} parent=39 // pred_check_branch
          %268 = sbr.rel (%p266) target = $region48
        $region47: #{light_featmap_to_latent.3} parent=39 // pred_region
          %p269 = scmp.lt.s32.totalorder %s17, 1
          %s270 = scalar_select %p269, %s17, 1
          %s271 = smul.addr %s270, 8
          %s272 = smul.addr %s271, 4
          %s273 = scalar_lea.vmem %s1, %s272
        $region48: #{light_featmap_to_latent.3} parent=39 // pred_fallthru
          _
      $region40: #{light_featmap_to_latent.3} parent=5 // pred_fallthru
        _
      %p274 = scmp.le.s32.totalorder 1, %s17
      %p275 = scmp.lt.s32.totalorder %s17, 3
      %p276 = pnand %p274, %p275
      %p277 = pneg %p276
      // Predicated region
      $region49: #{light_featmap_to_latent.3} parent=5 // pred_check
        _
      $region50: #{light_featmap_to_latent.3} parent=5 // pred_check_branch
        %279 = sbr.rel (%p276) target = $region52
      $region51: #{light_featmap_to_latent.3} parent=5 // pred_region
        %s280 = ssub.s32 %s17, 1
        %p281 = scmp.lt.s32.totalorder %s22, 1
        %s282 = scalar_select %p281, %s22, 1
        %s283 = smul.addr %s282, 20
        %s284 = smul.addr %s283, 8
        %s285 = scalar_lea.vmem %s0, %s284
        %p286 = pneg %p43
        %p287 = pneg %p40
        %p288 = scmp.lt.s32.totalorder %s22, 1
        %s289 = scalar_select %p288, %s22, 1
        %s290 = smul.addr %s289, 8
        %s291 = smul.addr %s290, 4
        %s292 = scalar_lea.vmem %s1, %s291
        %p293 = pneg %p69
        %p294 = pneg %p66
        %p295 = pneg %p90
        %p296 = pneg %p87
        %p297 = pneg %p111
        %p298 = pneg %p108
        %p299 = pneg %p132
        %p300 = pneg %p129
        %p301 = pneg %p153
        %p302 = pneg %p150
        %p303 = pneg %p174
        %p304 = pneg %p171
        %p305 = pneg %p195
        %p306 = pneg %p192
        %p307 = pneg %p221
        %p308 = pneg %p218
        %s309 = sand.u32 %s208, 1
        %s310 = scalar_lea.sflag [#allocation3], %s309
        %s311 = sand.u32 %s208, 1
        %s312 = scalar_lea.vmem [#allocation2], %s311
        %p313 = scmp.lt.s32.totalorder %s22, 1
        %s314 = scalar_select %p313, %s22, 1
        %s315 = smul.addr %s314, 20
        %s316 = smul.addr %s315, 8
        %s317 = scalar_lea.vmem %s0, %s316
        %p318 = scmp.lt.s32.totalorder %s22, 1
        %s319 = scalar_select %p318, %s22, 1
        %s320 = smul.addr %s319, 8
        %s321 = smul.addr %s320, 4
        %s322 = scalar_lea.vmem %s1, %s321
        %v324 = vld [vmem:[%s317] sm:$0xff]
        %v325 = vld [vmem:[%s317 + $0x10] sm:$0xff]
        %v326 = vld [vmem:[%s317 + $0x20] sm:$0xff]
        %v327 = vld [vmem:[%s317 + $0x30] sm:$0xff]
        %v328 = vld [vmem:[%s317 + $0x40] sm:$0xff]
        %v329 = vld [vmem:[%s317 + $0x50] sm:$0xff]
        %v330 = vld [vmem:[%s317 + $0x60] sm:$0xff]
        %v331 = vld [vmem:[%s317 + $0x70] sm:$0xff]
        %v332 = vpack.c.bf16 %v325, %v324
        %v333 = vpack.c.bf16 %v327, %v326
        %v334 = vpack.c.bf16 %v329, %v328
        %v335 = vpack.c.bf16 %v331, %v330
        %v336 = vld [vmem:[%s2] sm:$0xf]
        %v337 = vld [vmem:[%s2 + $0x4] sm:$0xf]
        %v338 = vld [vmem:[%s2 + $0x8] sm:$0xf]
        %v339 = vld [vmem:[%s2 + $0xc] sm:$0xf]
        %v340 = vld [vmem:[%s2 + $0x10] sm:$0xf]
        %v341 = vld [vmem:[%s2 + $0x14] sm:$0xf]
        %v342 = vld [vmem:[%s2 + $0x18] sm:$0xf]
        %v343 = vld [vmem:[%s2 + $0x1c] sm:$0xf]
        %v344 = vld [vmem:[%s2 + $0x20] sm:$0xf]
        %v345 = vld [vmem:[%s2 + $0x24] sm:$0xf]
        %v346 = vld [vmem:[%s2 + $0x28] sm:$0xf]
        %v347 = vld [vmem:[%s2 + $0x2c] sm:$0xf]
        %v348 = vld [vmem:[%s2 + $0x30] sm:$0xf]
        %v349 = vld [vmem:[%s2 + $0x34] sm:$0xf]
        %v350 = vld [vmem:[%s2 + $0x38] sm:$0xf]
        %v351 = vld [vmem:[%s2 + $0x3c] sm:$0xf]
        %v352 = vld [vmem:[%s317 + $0x1] sm:$0xff]
        %v353 = vld [vmem:[%s317 + $0x11] sm:$0xff]
        %v354 = vld [vmem:[%s317 + $0x21] sm:$0xff]
        %v355 = vld [vmem:[%s317 + $0x31] sm:$0xff]
        %v356 = vld [vmem:[%s317 + $0x41] sm:$0xff]
        %v357 = vld [vmem:[%s317 + $0x51] sm:$0xff]
        %v358 = vld [vmem:[%s317 + $0x61] sm:$0xff]
        %v359 = vld [vmem:[%s317 + $0x71] sm:$0xff]
        %v360 = vpack.c.bf16 %v353, %v352
        %v361 = vpack.c.bf16 %v355, %v354
        %v362 = vpack.c.bf16 %v357, %v356
        %v363 = vpack.c.bf16 %v359, %v358
        %s364 = scalar_lea.vmem %s2, 64
        %v365 = vld [vmem:[%s364] sm:$0xf]
        %v366 = vld [vmem:[%s364 + $0x4] sm:$0xf]
        %v367 = vld [vmem:[%s364 + $0x8] sm:$0xf]
        %v368 = vld [vmem:[%s364 + $0xc] sm:$0xf]
        %v369 = vld [vmem:[%s364 + $0x10] sm:$0xf]
        %v370 = vld [vmem:[%s364 + $0x14] sm:$0xf]
        %v371 = vld [vmem:[%s364 + $0x18] sm:$0xf]
        %v372 = vld [vmem:[%s364 + $0x1c] sm:$0xf]
        %v373 = vld [vmem:[%s364 + $0x20] sm:$0xf]
        %v374 = vld [vmem:[%s364 + $0x24] sm:$0xf]
        %v375 = vld [vmem:[%s364 + $0x28] sm:$0xf]
        %v376 = vld [vmem:[%s364 + $0x2c] sm:$0xf]
        %v377 = vld [vmem:[%s364 + $0x30] sm:$0xf]
        %v378 = vld [vmem:[%s364 + $0x34] sm:$0xf]
        %v379 = vld [vmem:[%s364 + $0x38] sm:$0xf]
        %v380 = vld [vmem:[%s364 + $0x3c] sm:$0xf]
        %v397 = vunpack.c.l.b16 %v365
        %v398 = vunpack.c.l.b16 %v366
        %v399 = vunpack.c.l.b16 %v367
        %v400 = vunpack.c.l.b16 %v368
        %v401 = vunpack.c.l.b16 %v369
        %v402 = vunpack.c.l.b16 %v370
        %v403 = vunpack.c.l.b16 %v371
        %v404 = vunpack.c.l.b16 %v372
        %v405 = vunpack.c.l.b16 %v373
        %v406 = vunpack.c.l.b16 %v374
        %v407 = vunpack.c.l.b16 %v375
        %v408 = vunpack.c.l.b16 %v376
        %v409 = vunpack.c.l.b16 %v377
        %v410 = vunpack.c.l.b16 %v378
        %v411 = vunpack.c.l.b16 %v379
        %v412 = vunpack.c.l.b16 %v380
        %v413 = vpack.c.b16 %v398, %v397
        %v414 = vpack.c.b16 %v400, %v399
        %v415 = vpack.c.b16 %v402, %v401
        %v416 = vpack.c.b16 %v404, %v403
        %v417 = vpack.c.b16 %v406, %v405
        %v418 = vpack.c.b16 %v408, %v407
        %v419 = vpack.c.b16 %v410, %v409
        %v420 = vpack.c.b16 %v412, %v411
        %429 = vmatprep.subr.bf16.mxu0 0
        %430 = vmatpush1.bf16.msra.mxu0 %v420
        %431 = vmatprep.subr.bf16.mxu0 0
        %432 = vmatpush1.bf16.msra.mxu0 %v419
        %433 = vmatprep.subr.bf16.mxu0 0
        %434 = vmatpush1.bf16.msra.mxu0 %v418
        %435 = vmatprep.subr.bf16.mxu0 0
        %436 = vmatpush1.bf16.msra.mxu0 %v417
        %437 = vmatprep.subr.bf16.mxu0 0
        %438 = vmatpush1.bf16.msra.mxu0 %v416
        %439 = vmatprep.subr.bf16.mxu0 0
        %440 = vmatpush1.bf16.msra.mxu0 %v415
        %441 = vmatprep.subr.bf16.mxu0 0
        %442 = vmatpush1.bf16.msra.mxu0 %v414
        %443 = vmatprep.subr.bf16.mxu0 0
        %444 = vmatpush1.bf16.msra.mxu0 %v413
        %445 = vmatprep.subr.bf16.mxu0 0
        %446 = vmatpush2.bf16.msra.mxu0 0
        %447 = vmatprep.subr.bf16.mxu0 0
        %448 = vmatpush2.bf16.msra.mxu0 0
        %449 = vmatprep.subr.bf16.mxu0 0
        %450 = vmatpush2.bf16.msra.mxu0 0
        %451 = vmatprep.subr.bf16.mxu0 0
        %452 = vmatpush2.bf16.msra.mxu0 0
        %453 = vmatprep.subr.bf16.mxu0 0
        %454 = vmatpush2.bf16.msra.mxu0 0
        %455 = vmatprep.subr.bf16.mxu0 0
        %456 = vmatpush2.bf16.msra.mxu0 0
        %457 = vmatprep.subr.bf16.mxu0 0
        %458 = vmatpush2.bf16.msra.mxu0 0
        %459 = vmatprep.subr.bf16.mxu0 0
        %460 = vmatpush2.bf16.msra.mxu0 0
        %461 = vmatprep.mubr.bf16.mxu0 0
        %462 = vmatmul.mubr.bf16.gmra.mxu0 %v360
        %v463 = vpop.f32.mrf.mxu0
        %v464 = vadd.f32 0.0, %v463
        %v465 = vpop.f32.mrf.mxu0
        %v466 = vpop.f32.mrf.mxu0
        %v467 = vadd.f32 0.0, %v466
        %v468 = vpop.f32.mrf.mxu0
        %469 = vmatprep.mubr.bf16.mxu0 0
        %470 = vmatmul.mubr.bf16.gmra.mxu0 %v361
        %v471 = vpop.f32.mrf.mxu0
        %v472 = vadd.f32 0.0, %v471
        %v473 = vpop.f32.mrf.mxu0
        %v474 = vpop.f32.mrf.mxu0
        %v475 = vadd.f32 0.0, %v474
        %v476 = vpop.f32.mrf.mxu0
        %477 = vmatprep.mubr.bf16.mxu0 0
        %478 = vmatmul.mubr.bf16.gmra.mxu0 %v362
        %v479 = vpop.f32.mrf.mxu0
        %v480 = vadd.f32 0.0, %v479
        %v481 = vpop.f32.mrf.mxu0
        %v482 = vpop.f32.mrf.mxu0
        %v483 = vadd.f32 0.0, %v482
        %v484 = vpop.f32.mrf.mxu0
        %485 = vmatprep.mubr.bf16.mxu0 0
        %486 = vmatmul.mubr.bf16.gmra.mxu0 %v363
        %v487 = vpop.f32.mrf.mxu0
        %v488 = vadd.f32 0.0, %v487
        %v489 = vpop.f32.mrf.mxu0
        %v490 = vpop.f32.mrf.mxu0
        %v491 = vadd.f32 0.0, %v490
        %v492 = vpop.f32.mrf.mxu0
        %493 = vdwg.mxu0
        %v510 = vunpack.c.l.b16 %v336
        %v511 = vunpack.c.l.b16 %v337
        %v512 = vunpack.c.l.b16 %v338
        %v513 = vunpack.c.l.b16 %v339
        %v514 = vunpack.c.l.b16 %v340
        %v515 = vunpack.c.l.b16 %v341
        %v516 = vunpack.c.l.b16 %v342
        %v517 = vunpack.c.l.b16 %v343
        %v518 = vunpack.c.l.b16 %v344
        %v519 = vunpack.c.l.b16 %v345
        %v520 = vunpack.c.l.b16 %v346
        %v521 = vunpack.c.l.b16 %v347
        %v522 = vunpack.c.l.b16 %v348
        %v523 = vunpack.c.l.b16 %v349
        %v524 = vunpack.c.l.b16 %v350
        %v525 = vunpack.c.l.b16 %v351
        %v526 = vpack.c.b16 %v511, %v510
        %v527 = vpack.c.b16 %v513, %v512
        %v528 = vpack.c.b16 %v515, %v514
        %v529 = vpack.c.b16 %v517, %v516
        %v530 = vpack.c.b16 %v519, %v518
        %v531 = vpack.c.b16 %v521, %v520
        %v532 = vpack.c.b16 %v523, %v522
        %v533 = vpack.c.b16 %v525, %v524
        %542 = vmatprep.subr.bf16.mxu0 0
        %543 = vmatpush1.bf16.msra.mxu0 %v533
        %544 = vmatprep.subr.bf16.mxu0 0
        %545 = vmatpush1.bf16.msra.mxu0 %v532
        %546 = vmatprep.subr.bf16.mxu0 0
        %547 = vmatpush1.bf16.msra.mxu0 %v531
        %548 = vmatprep.subr.bf16.mxu0 0
        %549 = vmatpush1.bf16.msra.mxu0 %v530
        %550 = vmatprep.subr.bf16.mxu0 0
        %551 = vmatpush1.bf16.msra.mxu0 %v529
        %552 = vmatprep.subr.bf16.mxu0 0
        %553 = vmatpush1.bf16.msra.mxu0 %v528
        %554 = vmatprep.subr.bf16.mxu0 0
        %555 = vmatpush1.bf16.msra.mxu0 %v527
        %556 = vmatprep.subr.bf16.mxu0 0
        %557 = vmatpush1.bf16.msra.mxu0 %v526
        %558 = vmatprep.subr.bf16.mxu0 0
        %559 = vmatpush2.bf16.msra.mxu0 0
        %560 = vmatprep.subr.bf16.mxu0 0
        %561 = vmatpush2.bf16.msra.mxu0 0
        %562 = vmatprep.subr.bf16.mxu0 0
        %563 = vmatpush2.bf16.msra.mxu0 0
        %564 = vmatprep.subr.bf16.mxu0 0
        %565 = vmatpush2.bf16.msra.mxu0 0
        %566 = vmatprep.subr.bf16.mxu0 0
        %567 = vmatpush2.bf16.msra.mxu0 0
        %568 = vmatprep.subr.bf16.mxu0 0
        %569 = vmatpush2.bf16.msra.mxu0 0
        %570 = vmatprep.subr.bf16.mxu0 0
        %571 = vmatpush2.bf16.msra.mxu0 0
        %572 = vmatprep.subr.bf16.mxu0 0
        %573 = vmatpush2.bf16.msra.mxu0 0
        %574 = vmatprep.mubr.bf16.mxu0 0
        %575 = vmatmul.mubr.bf16.gmra.mxu0 %v332
        %v576 = vpop.f32.mrf.mxu0
        %v577 = vadd.f32 %v464, %v576
        %v578 = vpop.f32.mrf.mxu0
        %v579 = vpop.f32.mrf.mxu0
        %v580 = vadd.f32 %v467, %v579
        %v581 = vpop.f32.mrf.mxu0
        %582 = vmatprep.mubr.bf16.mxu0 0
        %583 = vmatmul.mubr.bf16.gmra.mxu0 %v333
        %v584 = vpop.f32.mrf.mxu0
        %v585 = vadd.f32 %v472, %v584
        %v586 = vpop.f32.mrf.mxu0
        %v587 = vpop.f32.mrf.mxu0
        %v588 = vadd.f32 %v475, %v587
        %v589 = vpop.f32.mrf.mxu0
        %590 = vmatprep.mubr.bf16.mxu0 0
        %591 = vmatmul.mubr.bf16.gmra.mxu0 %v334
        %v592 = vpop.f32.mrf.mxu0
        %v593 = vadd.f32 %v480, %v592
        %v594 = vpop.f32.mrf.mxu0
        %v595 = vpop.f32.mrf.mxu0
        %v596 = vadd.f32 %v483, %v595
        %v597 = vpop.f32.mrf.mxu0
        %598 = vmatprep.mubr.bf16.mxu0 0
        %599 = vmatmul.mubr.bf16.gmra.mxu0 %v335
        %v600 = vpop.f32.mrf.mxu0
        %v601 = vadd.f32 %v488, %v600
        %v602 = vpop.f32.mrf.mxu0
        %v603 = vpop.f32.mrf.mxu0
        %v604 = vadd.f32 %v491, %v603
        %v605 = vpop.f32.mrf.mxu0
        %606 = vdwg.mxu0
        %v607 = vld [vmem:[%s317 + $0x2] sm:$0xff]
        %v608 = vld [vmem:[%s317 + $0x12] sm:$0xff]
        %v609 = vld [vmem:[%s317 + $0x22] sm:$0xff]
        %v610 = vld [vmem:[%s317 + $0x32] sm:$0xff]
        %v611 = vld [vmem:[%s317 + $0x42] sm:$0xff]
        %v612 = vld [vmem:[%s317 + $0x52] sm:$0xff]
        %v613 = vld [vmem:[%s317 + $0x62] sm:$0xff]
        %v614 = vld [vmem:[%s317 + $0x72] sm:$0xff]
        %v615 = vpack.c.bf16 %v608, %v607
        %v616 = vpack.c.bf16 %v610, %v609
        %v617 = vpack.c.bf16 %v612, %v611
        %v618 = vpack.c.bf16 %v614, %v613
        %s619 = scalar_lea.vmem %s2, 128
        %v620 = vld [vmem:[%s619] sm:$0xf]
        %v621 = vld [vmem:[%s619 + $0x4] sm:$0xf]
        %v622 = vld [vmem:[%s619 + $0x8] sm:$0xf]
        %v623 = vld [vmem:[%s619 + $0xc] sm:$0xf]
        %v624 = vld [vmem:[%s619 + $0x10] sm:$0xf]
        %v625 = vld [vmem:[%s619 + $0x14] sm:$0xf]
        %v626 = vld [vmem:[%s619 + $0x18] sm:$0xf]
        %v627 = vld [vmem:[%s619 + $0x1c] sm:$0xf]
        %v628 = vld [vmem:[%s619 + $0x20] sm:$0xf]
        %v629 = vld [vmem:[%s619 + $0x24] sm:$0xf]
        %v630 = vld [vmem:[%s619 + $0x28] sm:$0xf]
        %v631 = vld [vmem:[%s619 + $0x2c] sm:$0xf]
        %v632 = vld [vmem:[%s619 + $0x30] sm:$0xf]
        %v633 = vld [vmem:[%s619 + $0x34] sm:$0xf]
        %v634 = vld [vmem:[%s619 + $0x38] sm:$0xf]
        %v635 = vld [vmem:[%s619 + $0x3c] sm:$0xf]
        %v652 = vunpack.c.l.b16 %v620
        %v653 = vunpack.c.l.b16 %v621
        %v654 = vunpack.c.l.b16 %v622
        %v655 = vunpack.c.l.b16 %v623
        %v656 = vunpack.c.l.b16 %v624
        %v657 = vunpack.c.l.b16 %v625
        %v658 = vunpack.c.l.b16 %v626
        %v659 = vunpack.c.l.b16 %v627
        %v660 = vunpack.c.l.b16 %v628
        %v661 = vunpack.c.l.b16 %v629
        %v662 = vunpack.c.l.b16 %v630
        %v663 = vunpack.c.l.b16 %v631
        %v664 = vunpack.c.l.b16 %v632
        %v665 = vunpack.c.l.b16 %v633
        %v666 = vunpack.c.l.b16 %v634
        %v667 = vunpack.c.l.b16 %v635
        %v668 = vpack.c.b16 %v653, %v652
        %v669 = vpack.c.b16 %v655, %v654
        %v670 = vpack.c.b16 %v657, %v656
        %v671 = vpack.c.b16 %v659, %v658
        %v672 = vpack.c.b16 %v661, %v660
        %v673 = vpack.c.b16 %v663, %v662
        %v674 = vpack.c.b16 %v665, %v664
        %v675 = vpack.c.b16 %v667, %v666
        %684 = vmatprep.subr.bf16.mxu0 0
        %685 = vmatpush1.bf16.msra.mxu0 %v675
        %686 = vmatprep.subr.bf16.mxu0 0
        %687 = vmatpush1.bf16.msra.mxu0 %v674
        %688 = vmatprep.subr.bf16.mxu0 0
        %689 = vmatpush1.bf16.msra.mxu0 %v673
        %690 = vmatprep.subr.bf16.mxu0 0
        %691 = vmatpush1.bf16.msra.mxu0 %v672
        %692 = vmatprep.subr.bf16.mxu0 0
        %693 = vmatpush1.bf16.msra.mxu0 %v671
        %694 = vmatprep.subr.bf16.mxu0 0
        %695 = vmatpush1.bf16.msra.mxu0 %v670
        %696 = vmatprep.subr.bf16.mxu0 0
        %697 = vmatpush1.bf16.msra.mxu0 %v669
        %698 = vmatprep.subr.bf16.mxu0 0
        %699 = vmatpush1.bf16.msra.mxu0 %v668
        %700 = vmatprep.subr.bf16.mxu0 0
        %701 = vmatpush2.bf16.msra.mxu0 0
        %702 = vmatprep.subr.bf16.mxu0 0
        %703 = vmatpush2.bf16.msra.mxu0 0
        %704 = vmatprep.subr.bf16.mxu0 0
        %705 = vmatpush2.bf16.msra.mxu0 0
        %706 = vmatprep.subr.bf16.mxu0 0
        %707 = vmatpush2.bf16.msra.mxu0 0
        %708 = vmatprep.subr.bf16.mxu0 0
        %709 = vmatpush2.bf16.msra.mxu0 0
        %710 = vmatprep.subr.bf16.mxu0 0
        %711 = vmatpush2.bf16.msra.mxu0 0
        %712 = vmatprep.subr.bf16.mxu0 0
        %713 = vmatpush2.bf16.msra.mxu0 0
        %714 = vmatprep.subr.bf16.mxu0 0
        %715 = vmatpush2.bf16.msra.mxu0 0
        %716 = vmatprep.mubr.bf16.mxu0 0
        %717 = vmatmul.mubr.bf16.gmra.mxu0 %v615
        %v718 = vpop.f32.mrf.mxu0
        %v719 = vadd.f32 0.0, %v718
        %v720 = vpop.f32.mrf.mxu0
        %v721 = vpop.f32.mrf.mxu0
        %v722 = vadd.f32 0.0, %v721
        %v723 = vpop.f32.mrf.mxu0
        %724 = vmatprep.mubr.bf16.mxu0 0
        %725 = vmatmul.mubr.bf16.gmra.mxu0 %v616
        %v726 = vpop.f32.mrf.mxu0
        %v727 = vadd.f32 0.0, %v726
        %v728 = vpop.f32.mrf.mxu0
        %v729 = vpop.f32.mrf.mxu0
        %v730 = vadd.f32 0.0, %v729
        %v731 = vpop.f32.mrf.mxu0
        %732 = vmatprep.mubr.bf16.mxu0 0
        %733 = vmatmul.mubr.bf16.gmra.mxu0 %v617
        %v734 = vpop.f32.mrf.mxu0
        %v735 = vadd.f32 0.0, %v734
        %v736 = vpop.f32.mrf.mxu0
        %v737 = vpop.f32.mrf.mxu0
        %v738 = vadd.f32 0.0, %v737
        %v739 = vpop.f32.mrf.mxu0
        %740 = vmatprep.mubr.bf16.mxu0 0
        %741 = vmatmul.mubr.bf16.gmra.mxu0 %v618
        %v742 = vpop.f32.mrf.mxu0
        %v743 = vadd.f32 0.0, %v742
        %v744 = vpop.f32.mrf.mxu0
        %v745 = vpop.f32.mrf.mxu0
        %v746 = vadd.f32 0.0, %v745
        %v747 = vpop.f32.mrf.mxu0
        %748 = vdwg.mxu0
        %v749 = vadd.f32 %v577, %v719
        %v750 = vadd.f32 %v580, %v722
        %v751 = vadd.f32 %v585, %v727
        %v752 = vadd.f32 %v588, %v730
        %v753 = vadd.f32 %v593, %v735
        %v754 = vadd.f32 %v596, %v738
        %v755 = vadd.f32 %v601, %v743
        %v756 = vadd.f32 %v604, %v746
        %s757 = scalar_lea.vmem %s317, 16
        %v758 = vld [vmem:[%s757] sm:$0xff]
        %v759 = vld [vmem:[%s757 + $0x10] sm:$0xff]
        %v760 = vld [vmem:[%s757 + $0x20] sm:$0xff]
        %v761 = vld [vmem:[%s757 + $0x30] sm:$0xff]
        %v762 = vld [vmem:[%s757 + $0x40] sm:$0xff]
        %v763 = vld [vmem:[%s757 + $0x50] sm:$0xff]
        %v764 = vld [vmem:[%s757 + $0x60] sm:$0xff]
        %v765 = vld [vmem:[%s757 + $0x70] sm:$0xff]
        %v766 = vpack.c.bf16 %v759, %v758
        %v767 = vpack.c.bf16 %v761, %v760
        %v768 = vpack.c.bf16 %v763, %v762
        %v769 = vpack.c.bf16 %v765, %v764
        %s770 = scalar_lea.vmem %s2, 192
        %v771 = vld [vmem:[%s770] sm:$0xf]
        %v772 = vld [vmem:[%s770 + $0x4] sm:$0xf]
        %v773 = vld [vmem:[%s770 + $0x8] sm:$0xf]
        %v774 = vld [vmem:[%s770 + $0xc] sm:$0xf]
        %v775 = vld [vmem:[%s770 + $0x10] sm:$0xf]
        %v776 = vld [vmem:[%s770 + $0x14] sm:$0xf]
        %v777 = vld [vmem:[%s770 + $0x18] sm:$0xf]
        %v778 = vld [vmem:[%s770 + $0x1c] sm:$0xf]
        %v779 = vld [vmem:[%s770 + $0x20] sm:$0xf]
        %v780 = vld [vmem:[%s770 + $0x24] sm:$0xf]
        %v781 = vld [vmem:[%s770 + $0x28] sm:$0xf]
        %v782 = vld [vmem:[%s770 + $0x2c] sm:$0xf]
        %v783 = vld [vmem:[%s770 + $0x30] sm:$0xf]
        %v784 = vld [vmem:[%s770 + $0x34] sm:$0xf]
        %v785 = vld [vmem:[%s770 + $0x38] sm:$0xf]
        %v786 = vld [vmem:[%s770 + $0x3c] sm:$0xf]
        %v803 = vunpack.c.l.b16 %v771
        %v804 = vunpack.c.l.b16 %v772
        %v805 = vunpack.c.l.b16 %v773
        %v806 = vunpack.c.l.b16 %v774
        %v807 = vunpack.c.l.b16 %v775
        %v808 = vunpack.c.l.b16 %v776
        %v809 = vunpack.c.l.b16 %v777
        %v810 = vunpack.c.l.b16 %v778
        %v811 = vunpack.c.l.b16 %v779
        %v812 = vunpack.c.l.b16 %v780
        %v813 = vunpack.c.l.b16 %v781
        %v814 = vunpack.c.l.b16 %v782
        %v815 = vunpack.c.l.b16 %v783
        %v816 = vunpack.c.l.b16 %v784
        %v817 = vunpack.c.l.b16 %v785
        %v818 = vunpack.c.l.b16 %v786
        %v819 = vpack.c.b16 %v804, %v803
        %v820 = vpack.c.b16 %v806, %v805
        %v821 = vpack.c.b16 %v808, %v807
        %v822 = vpack.c.b16 %v810, %v809
        %v823 = vpack.c.b16 %v812, %v811
        %v824 = vpack.c.b16 %v814, %v813
        %v825 = vpack.c.b16 %v816, %v815
        %v826 = vpack.c.b16 %v818, %v817
        %835 = vmatprep.subr.bf16.mxu0 0
        %836 = vmatpush1.bf16.msra.mxu0 %v826
        %837 = vmatprep.subr.bf16.mxu0 0
        %838 = vmatpush1.bf16.msra.mxu0 %v825
        %839 = vmatprep.subr.bf16.mxu0 0
        %840 = vmatpush1.bf16.msra.mxu0 %v824
        %841 = vmatprep.subr.bf16.mxu0 0
        %842 = vmatpush1.bf16.msra.mxu0 %v823
        %843 = vmatprep.subr.bf16.mxu0 0
        %844 = vmatpush1.bf16.msra.mxu0 %v822
        %845 = vmatprep.subr.bf16.mxu0 0
        %846 = vmatpush1.bf16.msra.mxu0 %v821
        %847 = vmatprep.subr.bf16.mxu0 0
        %848 = vmatpush1.bf16.msra.mxu0 %v820
        %849 = vmatprep.subr.bf16.mxu0 0
        %850 = vmatpush1.bf16.msra.mxu0 %v819
        %851 = vmatprep.subr.bf16.mxu0 0
        %852 = vmatpush2.bf16.msra.mxu0 0
        %853 = vmatprep.subr.bf16.mxu0 0
        %854 = vmatpush2.bf16.msra.mxu0 0
        %855 = vmatprep.subr.bf16.mxu0 0
        %856 = vmatpush2.bf16.msra.mxu0 0
        %857 = vmatprep.subr.bf16.mxu0 0
        %858 = vmatpush2.bf16.msra.mxu0 0
        %859 = vmatprep.subr.bf16.mxu0 0
        %860 = vmatpush2.bf16.msra.mxu0 0
        %861 = vmatprep.subr.bf16.mxu0 0
        %862 = vmatpush2.bf16.msra.mxu0 0
        %863 = vmatprep.subr.bf16.mxu0 0
        %864 = vmatpush2.bf16.msra.mxu0 0
        %865 = vmatprep.subr.bf16.mxu0 0
        %866 = vmatpush2.bf16.msra.mxu0 0
        %867 = vmatprep.mubr.bf16.mxu0 0
        %868 = vmatmul.mubr.bf16.gmra.mxu0 %v766
        %v869 = vpop.f32.mrf.mxu0
        %v870 = vadd.f32 0.0, %v869
        %v871 = vpop.f32.mrf.mxu0
        %v872 = vpop.f32.mrf.mxu0
        %v873 = vadd.f32 0.0, %v872
        %v874 = vpop.f32.mrf.mxu0
        %875 = vmatprep.mubr.bf16.mxu0 0
        %876 = vmatmul.mubr.bf16.gmra.mxu0 %v767
        %v877 = vpop.f32.mrf.mxu0
        %v878 = vadd.f32 0.0, %v877
        %v879 = vpop.f32.mrf.mxu0
        %v880 = vpop.f32.mrf.mxu0
        %v881 = vadd.f32 0.0, %v880
        %v882 = vpop.f32.mrf.mxu0
        %883 = vmatprep.mubr.bf16.mxu0 0
        %884 = vmatmul.mubr.bf16.gmra.mxu0 %v768
        %v885 = vpop.f32.mrf.mxu0
        %v886 = vadd.f32 0.0, %v885
        %v887 = vpop.f32.mrf.mxu0
        %v888 = vpop.f32.mrf.mxu0
        %v889 = vadd.f32 0.0, %v888
        %v890 = vpop.f32.mrf.mxu0
        %891 = vmatprep.mubr.bf16.mxu0 0
        %892 = vmatmul.mubr.bf16.gmra.mxu0 %v769
        %v893 = vpop.f32.mrf.mxu0
        %v894 = vadd.f32 0.0, %v893
        %v895 = vpop.f32.mrf.mxu0
        %v896 = vpop.f32.mrf.mxu0
        %v897 = vadd.f32 0.0, %v896
        %v898 = vpop.f32.mrf.mxu0
        %899 = vdwg.mxu0
        %v900 = vadd.f32 %v749, %v870
        %v901 = vadd.f32 %v750, %v873
        %v902 = vadd.f32 %v751, %v878
        %v903 = vadd.f32 %v752, %v881
        %v904 = vadd.f32 %v753, %v886
        %v905 = vadd.f32 %v754, %v889
        %v906 = vadd.f32 %v755, %v894
        %v907 = vadd.f32 %v756, %v897
        %v908 = vld [vmem:[%s757 + $0x1] sm:$0xff]
        %v909 = vld [vmem:[%s757 + $0x11] sm:$0xff]
        %v910 = vld [vmem:[%s757 + $0x21] sm:$0xff]
        %v911 = vld [vmem:[%s757 + $0x31] sm:$0xff]
        %v912 = vld [vmem:[%s757 + $0x41] sm:$0xff]
        %v913 = vld [vmem:[%s757 + $0x51] sm:$0xff]
        %v914 = vld [vmem:[%s757 + $0x61] sm:$0xff]
        %v915 = vld [vmem:[%s757 + $0x71] sm:$0xff]
        %v916 = vpack.c.bf16 %v909, %v908
        %v917 = vpack.c.bf16 %v911, %v910
        %v918 = vpack.c.bf16 %v913, %v912
        %v919 = vpack.c.bf16 %v915, %v914
        %s920 = scalar_lea.vmem %s2, 256
        %v921 = vld [vmem:[%s920] sm:$0xf]
        %v922 = vld [vmem:[%s920 + $0x4] sm:$0xf]
        %v923 = vld [vmem:[%s920 + $0x8] sm:$0xf]
        %v924 = vld [vmem:[%s920 + $0xc] sm:$0xf]
        %v925 = vld [vmem:[%s920 + $0x10] sm:$0xf]
        %v926 = vld [vmem:[%s920 + $0x14] sm:$0xf]
        %v927 = vld [vmem:[%s920 + $0x18] sm:$0xf]
        %v928 = vld [vmem:[%s920 + $0x1c] sm:$0xf]
        %v929 = vld [vmem:[%s920 + $0x20] sm:$0xf]
        %v930 = vld [vmem:[%s920 + $0x24] sm:$0xf]
        %v931 = vld [vmem:[%s920 + $0x28] sm:$0xf]
        %v932 = vld [vmem:[%s920 + $0x2c] sm:$0xf]
        %v933 = vld [vmem:[%s920 + $0x30] sm:$0xf]
        %v934 = vld [vmem:[%s920 + $0x34] sm:$0xf]
        %v935 = vld [vmem:[%s920 + $0x38] sm:$0xf]
        %v936 = vld [vmem:[%s920 + $0x3c] sm:$0xf]
        %v953 = vunpack.c.l.b16 %v921
        %v954 = vunpack.c.l.b16 %v922
        %v955 = vunpack.c.l.b16 %v923
        %v956 = vunpack.c.l.b16 %v924
        %v957 = vunpack.c.l.b16 %v925
        %v958 = vunpack.c.l.b16 %v926
        %v959 = vunpack.c.l.b16 %v927
        %v960 = vunpack.c.l.b16 %v928
        %v961 = vunpack.c.l.b16 %v929
        %v962 = vunpack.c.l.b16 %v930
        %v963 = vunpack.c.l.b16 %v931
        %v964 = vunpack.c.l.b16 %v932
        %v965 = vunpack.c.l.b16 %v933
        %v966 = vunpack.c.l.b16 %v934
        %v967 = vunpack.c.l.b16 %v935
        %v968 = vunpack.c.l.b16 %v936
        %v969 = vpack.c.b16 %v954, %v953
        %v970 = vpack.c.b16 %v956, %v955
        %v971 = vpack.c.b16 %v958, %v957
        %v972 = vpack.c.b16 %v960, %v959
        %v973 = vpack.c.b16 %v962, %v961
        %v974 = vpack.c.b16 %v964, %v963
        %v975 = vpack.c.b16 %v966, %v965
        %v976 = vpack.c.b16 %v968, %v967
        %985 = vmatprep.subr.bf16.mxu0 0
        %986 = vmatpush1.bf16.msra.mxu0 %v976
        %987 = vmatprep.subr.bf16.mxu0 0
        %988 = vmatpush1.bf16.msra.mxu0 %v975
        %989 = vmatprep.subr.bf16.mxu0 0
        %990 = vmatpush1.bf16.msra.mxu0 %v974
        %991 = vmatprep.subr.bf16.mxu0 0
        %992 = vmatpush1.bf16.msra.mxu0 %v973
        %993 = vmatprep.subr.bf16.mxu0 0
        %994 = vmatpush1.bf16.msra.mxu0 %v972
        %995 = vmatprep.subr.bf16.mxu0 0
        %996 = vmatpush1.bf16.msra.mxu0 %v971
        %997 = vmatprep.subr.bf16.mxu0 0
        %998 = vmatpush1.bf16.msra.mxu0 %v970
        %999 = vmatprep.subr.bf16.mxu0 0
        %1000 = vmatpush1.bf16.msra.mxu0 %v969
        %1001 = vmatprep.subr.bf16.mxu0 0
        %1002 = vmatpush2.bf16.msra.mxu0 0
        %1003 = vmatprep.subr.bf16.mxu0 0
        %1004 = vmatpush2.bf16.msra.mxu0 0
        %1005 = vmatprep.subr.bf16.mxu0 0
        %1006 = vmatpush2.bf16.msra.mxu0 0
        %1007 = vmatprep.subr.bf16.mxu0 0
        %1008 = vmatpush2.bf16.msra.mxu0 0
        %1009 = vmatprep.subr.bf16.mxu0 0
        %1010 = vmatpush2.bf16.msra.mxu0 0
        %1011 = vmatprep.subr.bf16.mxu0 0
        %1012 = vmatpush2.bf16.msra.mxu0 0
        %1013 = vmatprep.subr.bf16.mxu0 0
        %1014 = vmatpush2.bf16.msra.mxu0 0
        %1015 = vmatprep.subr.bf16.mxu0 0
        %1016 = vmatpush2.bf16.msra.mxu0 0
        %1017 = vmatprep.mubr.bf16.mxu0 0
        %1018 = vmatmul.mubr.bf16.gmra.mxu0 %v916
        %v1019 = vpop.f32.mrf.mxu0
        %v1020 = vadd.f32 0.0, %v1019
        %v1021 = vpop.f32.mrf.mxu0
        %v1022 = vpop.f32.mrf.mxu0
        %v1023 = vadd.f32 0.0, %v1022
        %v1024 = vpop.f32.mrf.mxu0
        %1025 = vmatprep.mubr.bf16.mxu0 0
        %1026 = vmatmul.mubr.bf16.gmra.mxu0 %v917
        %v1027 = vpop.f32.mrf.mxu0
        %v1028 = vadd.f32 0.0, %v1027
        %v1029 = vpop.f32.mrf.mxu0
        %v1030 = vpop.f32.mrf.mxu0
        %v1031 = vadd.f32 0.0, %v1030
        %v1032 = vpop.f32.mrf.mxu0
        %1033 = vmatprep.mubr.bf16.mxu0 0
        %1034 = vmatmul.mubr.bf16.gmra.mxu0 %v918
        %v1035 = vpop.f32.mrf.mxu0
        %v1036 = vadd.f32 0.0, %v1035
        %v1037 = vpop.f32.mrf.mxu0
        %v1038 = vpop.f32.mrf.mxu0
        %v1039 = vadd.f32 0.0, %v1038
        %v1040 = vpop.f32.mrf.mxu0
        %1041 = vmatprep.mubr.bf16.mxu0 0
        %1042 = vmatmul.mubr.bf16.gmra.mxu0 %v919
        %v1043 = vpop.f32.mrf.mxu0
        %v1044 = vadd.f32 0.0, %v1043
        %v1045 = vpop.f32.mrf.mxu0
        %v1046 = vpop.f32.mrf.mxu0
        %v1047 = vadd.f32 0.0, %v1046
        %v1048 = vpop.f32.mrf.mxu0
        %1049 = vdwg.mxu0
        %v1050 = vadd.f32 %v900, %v1020
        %v1051 = vadd.f32 %v901, %v1023
        %v1052 = vadd.f32 %v902, %v1028
        %v1053 = vadd.f32 %v903, %v1031
        %v1054 = vadd.f32 %v904, %v1036
        %v1055 = vadd.f32 %v905, %v1039
        %v1056 = vadd.f32 %v906, %v1044
        %v1057 = vadd.f32 %v907, %v1047
        %v1058 = vld [vmem:[%s757 + $0x2] sm:$0xff]
        %v1059 = vld [vmem:[%s757 + $0x12] sm:$0xff]
        %v1060 = vld [vmem:[%s757 + $0x22] sm:$0xff]
        %v1061 = vld [vmem:[%s757 + $0x32] sm:$0xff]
        %v1062 = vld [vmem:[%s757 + $0x42] sm:$0xff]
        %v1063 = vld [vmem:[%s757 + $0x52] sm:$0xff]
        %v1064 = vld [vmem:[%s757 + $0x62] sm:$0xff]
        %v1065 = vld [vmem:[%s757 + $0x72] sm:$0xff]
        %v1066 = vpack.c.bf16 %v1059, %v1058
        %v1067 = vpack.c.bf16 %v1061, %v1060
        %v1068 = vpack.c.bf16 %v1063, %v1062
        %v1069 = vpack.c.bf16 %v1065, %v1064
        %s1070 = scalar_lea.vmem %s2, 320
        %v1071 = vld [vmem:[%s1070] sm:$0xf]
        %v1072 = vld [vmem:[%s1070 + $0x4] sm:$0xf]
        %v1073 = vld [vmem:[%s1070 + $0x8] sm:$0xf]
        %v1074 = vld [vmem:[%s1070 + $0xc] sm:$0xf]
        %v1075 = vld [vmem:[%s1070 + $0x10] sm:$0xf]
        %v1076 = vld [vmem:[%s1070 + $0x14] sm:$0xf]
        %v1077 = vld [vmem:[%s1070 + $0x18] sm:$0xf]
        %v1078 = vld [vmem:[%s1070 + $0x1c] sm:$0xf]
        %v1079 = vld [vmem:[%s1070 + $0x20] sm:$0xf]
        %v1080 = vld [vmem:[%s1070 + $0x24] sm:$0xf]
        %v1081 = vld [vmem:[%s1070 + $0x28] sm:$0xf]
        %v1082 = vld [vmem:[%s1070 + $0x2c] sm:$0xf]
        %v1083 = vld [vmem:[%s1070 + $0x30] sm:$0xf]
        %v1084 = vld [vmem:[%s1070 + $0x34] sm:$0xf]
        %v1085 = vld [vmem:[%s1070 + $0x38] sm:$0xf]
        %v1086 = vld [vmem:[%s1070 + $0x3c] sm:$0xf]
        %v1103 = vunpack.c.l.b16 %v1071
        %v1104 = vunpack.c.l.b16 %v1072
        %v1105 = vunpack.c.l.b16 %v1073
        %v1106 = vunpack.c.l.b16 %v1074
        %v1107 = vunpack.c.l.b16 %v1075
        %v1108 = vunpack.c.l.b16 %v1076
        %v1109 = vunpack.c.l.b16 %v1077
        %v1110 = vunpack.c.l.b16 %v1078
        %v1111 = vunpack.c.l.b16 %v1079
        %v1112 = vunpack.c.l.b16 %v1080
        %v1113 = vunpack.c.l.b16 %v1081
        %v1114 = vunpack.c.l.b16 %v1082
        %v1115 = vunpack.c.l.b16 %v1083
        %v1116 = vunpack.c.l.b16 %v1084
        %v1117 = vunpack.c.l.b16 %v1085
        %v1118 = vunpack.c.l.b16 %v1086
        %v1119 = vpack.c.b16 %v1104, %v1103
        %v1120 = vpack.c.b16 %v1106, %v1105
        %v1121 = vpack.c.b16 %v1108, %v1107
        %v1122 = vpack.c.b16 %v1110, %v1109
        %v1123 = vpack.c.b16 %v1112, %v1111
        %v1124 = vpack.c.b16 %v1114, %v1113
        %v1125 = vpack.c.b16 %v1116, %v1115
        %v1126 = vpack.c.b16 %v1118, %v1117
        %1135 = vmatprep.subr.bf16.mxu0 0
        %1136 = vmatpush1.bf16.msra.mxu0 %v1126
        %1137 = vmatprep.subr.bf16.mxu0 0
        %1138 = vmatpush1.bf16.msra.mxu0 %v1125
        %1139 = vmatprep.subr.bf16.mxu0 0
        %1140 = vmatpush1.bf16.msra.mxu0 %v1124
        %1141 = vmatprep.subr.bf16.mxu0 0
        %1142 = vmatpush1.bf16.msra.mxu0 %v1123
        %1143 = vmatprep.subr.bf16.mxu0 0
        %1144 = vmatpush1.bf16.msra.mxu0 %v1122
        %1145 = vmatprep.subr.bf16.mxu0 0
        %1146 = vmatpush1.bf16.msra.mxu0 %v1121
        %1147 = vmatprep.subr.bf16.mxu0 0
        %1148 = vmatpush1.bf16.msra.mxu0 %v1120
        %1149 = vmatprep.subr.bf16.mxu0 0
        %1150 = vmatpush1.bf16.msra.mxu0 %v1119
        %1151 = vmatprep.subr.bf16.mxu0 0
        %1152 = vmatpush2.bf16.msra.mxu0 0
        %1153 = vmatprep.subr.bf16.mxu0 0
        %1154 = vmatpush2.bf16.msra.mxu0 0
        %1155 = vmatprep.subr.bf16.mxu0 0
        %1156 = vmatpush2.bf16.msra.mxu0 0
        %1157 = vmatprep.subr.bf16.mxu0 0
        %1158 = vmatpush2.bf16.msra.mxu0 0
        %1159 = vmatprep.subr.bf16.mxu0 0
        %1160 = vmatpush2.bf16.msra.mxu0 0
        %1161 = vmatprep.subr.bf16.mxu0 0
        %1162 = vmatpush2.bf16.msra.mxu0 0
        %1163 = vmatprep.subr.bf16.mxu0 0
        %1164 = vmatpush2.bf16.msra.mxu0 0
        %1165 = vmatprep.subr.bf16.mxu0 0
        %1166 = vmatpush2.bf16.msra.mxu0 0
        %1167 = vmatprep.mubr.bf16.mxu0 0
        %1168 = vmatmul.mubr.bf16.gmra.mxu0 %v1066
        %v1169 = vpop.f32.mrf.mxu0
        %v1170 = vadd.f32 0.0, %v1169
        %v1171 = vpop.f32.mrf.mxu0
        %v1172 = vpop.f32.mrf.mxu0
        %v1173 = vadd.f32 0.0, %v1172
        %v1174 = vpop.f32.mrf.mxu0
        %1175 = vmatprep.mubr.bf16.mxu0 0
        %1176 = vmatmul.mubr.bf16.gmra.mxu0 %v1067
        %v1177 = vpop.f32.mrf.mxu0
        %v1178 = vadd.f32 0.0, %v1177
        %v1179 = vpop.f32.mrf.mxu0
        %v1180 = vpop.f32.mrf.mxu0
        %v1181 = vadd.f32 0.0, %v1180
        %v1182 = vpop.f32.mrf.mxu0
        %1183 = vmatprep.mubr.bf16.mxu0 0
        %1184 = vmatmul.mubr.bf16.gmra.mxu0 %v1068
        %v1185 = vpop.f32.mrf.mxu0
        %v1186 = vadd.f32 0.0, %v1185
        %v1187 = vpop.f32.mrf.mxu0
        %v1188 = vpop.f32.mrf.mxu0
        %v1189 = vadd.f32 0.0, %v1188
        %v1190 = vpop.f32.mrf.mxu0
        %1191 = vmatprep.mubr.bf16.mxu0 0
        %1192 = vmatmul.mubr.bf16.gmra.mxu0 %v1069
        %v1193 = vpop.f32.mrf.mxu0
        %v1194 = vadd.f32 0.0, %v1193
        %v1195 = vpop.f32.mrf.mxu0
        %v1196 = vpop.f32.mrf.mxu0
        %v1197 = vadd.f32 0.0, %v1196
        %v1198 = vpop.f32.mrf.mxu0
        %1199 = vdwg.mxu0
        %v1200 = vadd.f32 %v1050, %v1170
        %v1201 = vadd.f32 %v1051, %v1173
        %v1202 = vadd.f32 %v1052, %v1178
        %v1203 = vadd.f32 %v1053, %v1181
        %v1204 = vadd.f32 %v1054, %v1186
        %v1205 = vadd.f32 %v1055, %v1189
        %v1206 = vadd.f32 %v1056, %v1194
        %v1207 = vadd.f32 %v1057, %v1197
        %s1208 = scalar_lea.vmem %s317, 32
        %v1209 = vld [vmem:[%s1208] sm:$0xff]
        %v1210 = vld [vmem:[%s1208 + $0x10] sm:$0xff]
        %v1211 = vld [vmem:[%s1208 + $0x20] sm:$0xff]
        %v1212 = vld [vmem:[%s1208 + $0x30] sm:$0xff]
        %v1213 = vld [vmem:[%s1208 + $0x40] sm:$0xff]
        %v1214 = vld [vmem:[%s1208 + $0x50] sm:$0xff]
        %v1215 = vld [vmem:[%s1208 + $0x60] sm:$0xff]
        %v1216 = vld [vmem:[%s1208 + $0x70] sm:$0xff]
        %v1217 = vpack.c.bf16 %v1210, %v1209
        %v1218 = vpack.c.bf16 %v1212, %v1211
        %v1219 = vpack.c.bf16 %v1214, %v1213
        %v1220 = vpack.c.bf16 %v1216, %v1215
        %s1221 = scalar_lea.vmem %s2, 384
        %v1222 = vld [vmem:[%s1221] sm:$0xf]
        %v1223 = vld [vmem:[%s1221 + $0x4] sm:$0xf]
        %v1224 = vld [vmem:[%s1221 + $0x8] sm:$0xf]
        %v1225 = vld [vmem:[%s1221 + $0xc] sm:$0xf]
        %v1226 = vld [vmem:[%s1221 + $0x10] sm:$0xf]
        %v1227 = vld [vmem:[%s1221 + $0x14] sm:$0xf]
        %v1228 = vld [vmem:[%s1221 + $0x18] sm:$0xf]
        %v1229 = vld [vmem:[%s1221 + $0x1c] sm:$0xf]
        %v1230 = vld [vmem:[%s1221 + $0x20] sm:$0xf]
        %v1231 = vld [vmem:[%s1221 + $0x24] sm:$0xf]
        %v1232 = vld [vmem:[%s1221 + $0x28] sm:$0xf]
        %v1233 = vld [vmem:[%s1221 + $0x2c] sm:$0xf]
        %v1234 = vld [vmem:[%s1221 + $0x30] sm:$0xf]
        %v1235 = vld [vmem:[%s1221 + $0x34] sm:$0xf]
        %v1236 = vld [vmem:[%s1221 + $0x38] sm:$0xf]
        %v1237 = vld [vmem:[%s1221 + $0x3c] sm:$0xf]
        %v1254 = vunpack.c.l.b16 %v1222
        %v1255 = vunpack.c.l.b16 %v1223
        %v1256 = vunpack.c.l.b16 %v1224
        %v1257 = vunpack.c.l.b16 %v1225
        %v1258 = vunpack.c.l.b16 %v1226
        %v1259 = vunpack.c.l.b16 %v1227
        %v1260 = vunpack.c.l.b16 %v1228
        %v1261 = vunpack.c.l.b16 %v1229
        %v1262 = vunpack.c.l.b16 %v1230
        %v1263 = vunpack.c.l.b16 %v1231
        %v1264 = vunpack.c.l.b16 %v1232
        %v1265 = vunpack.c.l.b16 %v1233
        %v1266 = vunpack.c.l.b16 %v1234
        %v1267 = vunpack.c.l.b16 %v1235
        %v1268 = vunpack.c.l.b16 %v1236
        %v1269 = vunpack.c.l.b16 %v1237
        %v1270 = vpack.c.b16 %v1255, %v1254
        %v1271 = vpack.c.b16 %v1257, %v1256
        %v1272 = vpack.c.b16 %v1259, %v1258
        %v1273 = vpack.c.b16 %v1261, %v1260
        %v1274 = vpack.c.b16 %v1263, %v1262
        %v1275 = vpack.c.b16 %v1265, %v1264
        %v1276 = vpack.c.b16 %v1267, %v1266
        %v1277 = vpack.c.b16 %v1269, %v1268
        %1286 = vmatprep.subr.bf16.mxu0 0
        %1287 = vmatpush1.bf16.msra.mxu0 %v1277
        %1288 = vmatprep.subr.bf16.mxu0 0
        %1289 = vmatpush1.bf16.msra.mxu0 %v1276
        %1290 = vmatprep.subr.bf16.mxu0 0
        %1291 = vmatpush1.bf16.msra.mxu0 %v1275
        %1292 = vmatprep.subr.bf16.mxu0 0
        %1293 = vmatpush1.bf16.msra.mxu0 %v1274
        %1294 = vmatprep.subr.bf16.mxu0 0
        %1295 = vmatpush1.bf16.msra.mxu0 %v1273
        %1296 = vmatprep.subr.bf16.mxu0 0
        %1297 = vmatpush1.bf16.msra.mxu0 %v1272
        %1298 = vmatprep.subr.bf16.mxu0 0
        %1299 = vmatpush1.bf16.msra.mxu0 %v1271
        %1300 = vmatprep.subr.bf16.mxu0 0
        %1301 = vmatpush1.bf16.msra.mxu0 %v1270
        %1302 = vmatprep.subr.bf16.mxu0 0
        %1303 = vmatpush2.bf16.msra.mxu0 0
        %1304 = vmatprep.subr.bf16.mxu0 0
        %1305 = vmatpush2.bf16.msra.mxu0 0
        %1306 = vmatprep.subr.bf16.mxu0 0
        %1307 = vmatpush2.bf16.msra.mxu0 0
        %1308 = vmatprep.subr.bf16.mxu0 0
        %1309 = vmatpush2.bf16.msra.mxu0 0
        %1310 = vmatprep.subr.bf16.mxu0 0
        %1311 = vmatpush2.bf16.msra.mxu0 0
        %1312 = vmatprep.subr.bf16.mxu0 0
        %1313 = vmatpush2.bf16.msra.mxu0 0
        %1314 = vmatprep.subr.bf16.mxu0 0
        %1315 = vmatpush2.bf16.msra.mxu0 0
        %1316 = vmatprep.subr.bf16.mxu0 0
        %1317 = vmatpush2.bf16.msra.mxu0 0
        %1318 = vmatprep.mubr.bf16.mxu0 0
        %1319 = vmatmul.mubr.bf16.gmra.mxu0 %v1217
        %v1320 = vpop.f32.mrf.mxu0
        %v1321 = vadd.f32 0.0, %v1320
        %v1322 = vpop.f32.mrf.mxu0
        %v1323 = vpop.f32.mrf.mxu0
        %v1324 = vadd.f32 0.0, %v1323
        %v1325 = vpop.f32.mrf.mxu0
        %1326 = vmatprep.mubr.bf16.mxu0 0
        %1327 = vmatmul.mubr.bf16.gmra.mxu0 %v1218
        %v1328 = vpop.f32.mrf.mxu0
        %v1329 = vadd.f32 0.0, %v1328
        %v1330 = vpop.f32.mrf.mxu0
        %v1331 = vpop.f32.mrf.mxu0
        %v1332 = vadd.f32 0.0, %v1331
        %v1333 = vpop.f32.mrf.mxu0
        %1334 = vmatprep.mubr.bf16.mxu0 0
        %1335 = vmatmul.mubr.bf16.gmra.mxu0 %v1219
        %v1336 = vpop.f32.mrf.mxu0
        %v1337 = vadd.f32 0.0, %v1336
        %v1338 = vpop.f32.mrf.mxu0
        %v1339 = vpop.f32.mrf.mxu0
        %v1340 = vadd.f32 0.0, %v1339
        %v1341 = vpop.f32.mrf.mxu0
        %1342 = vmatprep.mubr.bf16.mxu0 0
        %1343 = vmatmul.mubr.bf16.gmra.mxu0 %v1220
        %v1344 = vpop.f32.mrf.mxu0
        %v1345 = vadd.f32 0.0, %v1344
        %v1346 = vpop.f32.mrf.mxu0
        %v1347 = vpop.f32.mrf.mxu0
        %v1348 = vadd.f32 0.0, %v1347
        %v1349 = vpop.f32.mrf.mxu0
        %1350 = vdwg.mxu0
        %v1351 = vadd.f32 %v1200, %v1321
        %v1352 = vadd.f32 %v1201, %v1324
        %v1353 = vadd.f32 %v1202, %v1329
        %v1354 = vadd.f32 %v1203, %v1332
        %v1355 = vadd.f32 %v1204, %v1337
        %v1356 = vadd.f32 %v1205, %v1340
        %v1357 = vadd.f32 %v1206, %v1345
        %v1358 = vadd.f32 %v1207, %v1348
        %v1359 = vld [vmem:[%s1208 + $0x1] sm:$0xff]
        %v1360 = vld [vmem:[%s1208 + $0x11] sm:$0xff]
        %v1361 = vld [vmem:[%s1208 + $0x21] sm:$0xff]
        %v1362 = vld [vmem:[%s1208 + $0x31] sm:$0xff]
        %v1363 = vld [vmem:[%s1208 + $0x41] sm:$0xff]
        %v1364 = vld [vmem:[%s1208 + $0x51] sm:$0xff]
        %v1365 = vld [vmem:[%s1208 + $0x61] sm:$0xff]
        %v1366 = vld [vmem:[%s1208 + $0x71] sm:$0xff]
        %v1367 = vpack.c.bf16 %v1360, %v1359
        %v1368 = vpack.c.bf16 %v1362, %v1361
        %v1369 = vpack.c.bf16 %v1364, %v1363
        %v1370 = vpack.c.bf16 %v1366, %v1365
        %s1371 = scalar_lea.vmem %s2, 448
        %v1372 = vld [vmem:[%s1371] sm:$0xf]
        %v1373 = vld [vmem:[%s1371 + $0x4] sm:$0xf]
        %v1374 = vld [vmem:[%s1371 + $0x8] sm:$0xf]
        %v1375 = vld [vmem:[%s1371 + $0xc] sm:$0xf]
        %v1376 = vld [vmem:[%s1371 + $0x10] sm:$0xf]
        %v1377 = vld [vmem:[%s1371 + $0x14] sm:$0xf]
        %v1378 = vld [vmem:[%s1371 + $0x18] sm:$0xf]
        %v1379 = vld [vmem:[%s1371 + $0x1c] sm:$0xf]
        %v1380 = vld [vmem:[%s1371 + $0x20] sm:$0xf]
        %v1381 = vld [vmem:[%s1371 + $0x24] sm:$0xf]
        %v1382 = vld [vmem:[%s1371 + $0x28] sm:$0xf]
        %v1383 = vld [vmem:[%s1371 + $0x2c] sm:$0xf]
        %v1384 = vld [vmem:[%s1371 + $0x30] sm:$0xf]
        %v1385 = vld [vmem:[%s1371 + $0x34] sm:$0xf]
        %v1386 = vld [vmem:[%s1371 + $0x38] sm:$0xf]
        %v1387 = vld [vmem:[%s1371 + $0x3c] sm:$0xf]
        %v1404 = vunpack.c.l.b16 %v1372
        %v1405 = vunpack.c.l.b16 %v1373
        %v1406 = vunpack.c.l.b16 %v1374
        %v1407 = vunpack.c.l.b16 %v1375
        %v1408 = vunpack.c.l.b16 %v1376
        %v1409 = vunpack.c.l.b16 %v1377
        %v1410 = vunpack.c.l.b16 %v1378
        %v1411 = vunpack.c.l.b16 %v1379
        %v1412 = vunpack.c.l.b16 %v1380
        %v1413 = vunpack.c.l.b16 %v1381
        %v1414 = vunpack.c.l.b16 %v1382
        %v1415 = vunpack.c.l.b16 %v1383
        %v1416 = vunpack.c.l.b16 %v1384
        %v1417 = vunpack.c.l.b16 %v1385
        %v1418 = vunpack.c.l.b16 %v1386
        %v1419 = vunpack.c.l.b16 %v1387
        %v1420 = vpack.c.b16 %v1405, %v1404
        %v1421 = vpack.c.b16 %v1407, %v1406
        %v1422 = vpack.c.b16 %v1409, %v1408
        %v1423 = vpack.c.b16 %v1411, %v1410
        %v1424 = vpack.c.b16 %v1413, %v1412
        %v1425 = vpack.c.b16 %v1415, %v1414
        %v1426 = vpack.c.b16 %v1417, %v1416
        %v1427 = vpack.c.b16 %v1419, %v1418
        %1436 = vmatprep.subr.bf16.mxu0 0
        %1437 = vmatpush1.bf16.msra.mxu0 %v1427
        %1438 = vmatprep.subr.bf16.mxu0 0
        %1439 = vmatpush1.bf16.msra.mxu0 %v1426
        %1440 = vmatprep.subr.bf16.mxu0 0
        %1441 = vmatpush1.bf16.msra.mxu0 %v1425
        %1442 = vmatprep.subr.bf16.mxu0 0
        %1443 = vmatpush1.bf16.msra.mxu0 %v1424
        %1444 = vmatprep.subr.bf16.mxu0 0
        %1445 = vmatpush1.bf16.msra.mxu0 %v1423
        %1446 = vmatprep.subr.bf16.mxu0 0
        %1447 = vmatpush1.bf16.msra.mxu0 %v1422
        %1448 = vmatprep.subr.bf16.mxu0 0
        %1449 = vmatpush1.bf16.msra.mxu0 %v1421
        %1450 = vmatprep.subr.bf16.mxu0 0
        %1451 = vmatpush1.bf16.msra.mxu0 %v1420
        %1452 = vmatprep.subr.bf16.mxu0 0
        %1453 = vmatpush2.bf16.msra.mxu0 0
        %1454 = vmatprep.subr.bf16.mxu0 0
        %1455 = vmatpush2.bf16.msra.mxu0 0
        %1456 = vmatprep.subr.bf16.mxu0 0
        %1457 = vmatpush2.bf16.msra.mxu0 0
        %1458 = vmatprep.subr.bf16.mxu0 0
        %1459 = vmatpush2.bf16.msra.mxu0 0
        %1460 = vmatprep.subr.bf16.mxu0 0
        %1461 = vmatpush2.bf16.msra.mxu0 0
        %1462 = vmatprep.subr.bf16.mxu0 0
        %1463 = vmatpush2.bf16.msra.mxu0 0
        %1464 = vmatprep.subr.bf16.mxu0 0
        %1465 = vmatpush2.bf16.msra.mxu0 0
        %1466 = vmatprep.subr.bf16.mxu0 0
        %1467 = vmatpush2.bf16.msra.mxu0 0
        %1468 = vmatprep.mubr.bf16.mxu0 0
        %1469 = vmatmul.mubr.bf16.gmra.mxu0 %v1367
        %v1470 = vpop.f32.mrf.mxu0
        %v1471 = vadd.f32 0.0, %v1470
        %v1472 = vpop.f32.mrf.mxu0
        %v1473 = vpop.f32.mrf.mxu0
        %v1474 = vadd.f32 0.0, %v1473
        %v1475 = vpop.f32.mrf.mxu0
        %1476 = vmatprep.mubr.bf16.mxu0 0
        %1477 = vmatmul.mubr.bf16.gmra.mxu0 %v1368
        %v1478 = vpop.f32.mrf.mxu0
        %v1479 = vadd.f32 0.0, %v1478
        %v1480 = vpop.f32.mrf.mxu0
        %v1481 = vpop.f32.mrf.mxu0
        %v1482 = vadd.f32 0.0, %v1481
        %v1483 = vpop.f32.mrf.mxu0
        %1484 = vmatprep.mubr.bf16.mxu0 0
        %1485 = vmatmul.mubr.bf16.gmra.mxu0 %v1369
        %v1486 = vpop.f32.mrf.mxu0
        %v1487 = vadd.f32 0.0, %v1486
        %v1488 = vpop.f32.mrf.mxu0
        %v1489 = vpop.f32.mrf.mxu0
        %v1490 = vadd.f32 0.0, %v1489
        %v1491 = vpop.f32.mrf.mxu0
        %1492 = vmatprep.mubr.bf16.mxu0 0
        %1493 = vmatmul.mubr.bf16.gmra.mxu0 %v1370
        %v1494 = vpop.f32.mrf.mxu0
        %v1495 = vadd.f32 0.0, %v1494
        %v1496 = vpop.f32.mrf.mxu0
        %v1497 = vpop.f32.mrf.mxu0
        %v1498 = vadd.f32 0.0, %v1497
        %v1499 = vpop.f32.mrf.mxu0
        %1500 = vdwg.mxu0
        %v1501 = vadd.f32 %v1351, %v1471
        %v1502 = vadd.f32 %v1352, %v1474
        %v1503 = vadd.f32 %v1353, %v1479
        %v1504 = vadd.f32 %v1354, %v1482
        %v1505 = vadd.f32 %v1355, %v1487
        %v1506 = vadd.f32 %v1356, %v1490
        %v1507 = vadd.f32 %v1357, %v1495
        %v1508 = vadd.f32 %v1358, %v1498
        %v1509 = vld [vmem:[%s1208 + $0x2] sm:$0xff]
        %v1510 = vld [vmem:[%s1208 + $0x12] sm:$0xff]
        %v1511 = vld [vmem:[%s1208 + $0x22] sm:$0xff]
        %v1512 = vld [vmem:[%s1208 + $0x32] sm:$0xff]
        %v1513 = vld [vmem:[%s1208 + $0x42] sm:$0xff]
        %v1514 = vld [vmem:[%s1208 + $0x52] sm:$0xff]
        %v1515 = vld [vmem:[%s1208 + $0x62] sm:$0xff]
        %v1516 = vld [vmem:[%s1208 + $0x72] sm:$0xff]
        %v1517 = vpack.c.bf16 %v1510, %v1509
        %v1518 = vpack.c.bf16 %v1512, %v1511
        %v1519 = vpack.c.bf16 %v1514, %v1513
        %v1520 = vpack.c.bf16 %v1516, %v1515
        %s1521 = scalar_lea.vmem %s2, 512
        %v1522 = vld [vmem:[%s1521] sm:$0xf]
        %v1523 = vld [vmem:[%s1521 + $0x4] sm:$0xf]
        %v1524 = vld [vmem:[%s1521 + $0x8] sm:$0xf]
        %v1525 = vld [vmem:[%s1521 + $0xc] sm:$0xf]
        %v1526 = vld [vmem:[%s1521 + $0x10] sm:$0xf]
        %v1527 = vld [vmem:[%s1521 + $0x14] sm:$0xf]
        %v1528 = vld [vmem:[%s1521 + $0x18] sm:$0xf]
        %v1529 = vld [vmem:[%s1521 + $0x1c] sm:$0xf]
        %v1530 = vld [vmem:[%s1521 + $0x20] sm:$0xf]
        %v1531 = vld [vmem:[%s1521 + $0x24] sm:$0xf]
        %v1532 = vld [vmem:[%s1521 + $0x28] sm:$0xf]
        %v1533 = vld [vmem:[%s1521 + $0x2c] sm:$0xf]
        %v1534 = vld [vmem:[%s1521 + $0x30] sm:$0xf]
        %v1535 = vld [vmem:[%s1521 + $0x34] sm:$0xf]
        %v1536 = vld [vmem:[%s1521 + $0x38] sm:$0xf]
        %v1537 = vld [vmem:[%s1521 + $0x3c] sm:$0xf]
        %v1554 = vunpack.c.l.b16 %v1522
        %v1555 = vunpack.c.l.b16 %v1523
        %v1556 = vunpack.c.l.b16 %v1524
        %v1557 = vunpack.c.l.b16 %v1525
        %v1558 = vunpack.c.l.b16 %v1526
        %v1559 = vunpack.c.l.b16 %v1527
        %v1560 = vunpack.c.l.b16 %v1528
        %v1561 = vunpack.c.l.b16 %v1529
        %v1562 = vunpack.c.l.b16 %v1530
        %v1563 = vunpack.c.l.b16 %v1531
        %v1564 = vunpack.c.l.b16 %v1532
        %v1565 = vunpack.c.l.b16 %v1533
        %v1566 = vunpack.c.l.b16 %v1534
        %v1567 = vunpack.c.l.b16 %v1535
        %v1568 = vunpack.c.l.b16 %v1536
        %v1569 = vunpack.c.l.b16 %v1537
        %v1570 = vpack.c.b16 %v1555, %v1554
        %v1571 = vpack.c.b16 %v1557, %v1556
        %v1572 = vpack.c.b16 %v1559, %v1558
        %v1573 = vpack.c.b16 %v1561, %v1560
        %v1574 = vpack.c.b16 %v1563, %v1562
        %v1575 = vpack.c.b16 %v1565, %v1564
        %v1576 = vpack.c.b16 %v1567, %v1566
        %v1577 = vpack.c.b16 %v1569, %v1568
        %1586 = vmatprep.subr.bf16.mxu0 0
        %1587 = vmatpush1.bf16.msra.mxu0 %v1577
        %1588 = vmatprep.subr.bf16.mxu0 0
        %1589 = vmatpush1.bf16.msra.mxu0 %v1576
        %1590 = vmatprep.subr.bf16.mxu0 0
        %1591 = vmatpush1.bf16.msra.mxu0 %v1575
        %1592 = vmatprep.subr.bf16.mxu0 0
        %1593 = vmatpush1.bf16.msra.mxu0 %v1574
        %1594 = vmatprep.subr.bf16.mxu0 0
        %1595 = vmatpush1.bf16.msra.mxu0 %v1573
        %1596 = vmatprep.subr.bf16.mxu0 0
        %1597 = vmatpush1.bf16.msra.mxu0 %v1572
        %1598 = vmatprep.subr.bf16.mxu0 0
        %1599 = vmatpush1.bf16.msra.mxu0 %v1571
        %1600 = vmatprep.subr.bf16.mxu0 0
        %1601 = vmatpush1.bf16.msra.mxu0 %v1570
        %1602 = vmatprep.subr.bf16.mxu0 0
        %1603 = vmatpush2.bf16.msra.mxu0 0
        %1604 = vmatprep.subr.bf16.mxu0 0
        %1605 = vmatpush2.bf16.msra.mxu0 0
        %1606 = vmatprep.subr.bf16.mxu0 0
        %1607 = vmatpush2.bf16.msra.mxu0 0
        %1608 = vmatprep.subr.bf16.mxu0 0
        %1609 = vmatpush2.bf16.msra.mxu0 0
        %1610 = vmatprep.subr.bf16.mxu0 0
        %1611 = vmatpush2.bf16.msra.mxu0 0
        %1612 = vmatprep.subr.bf16.mxu0 0
        %1613 = vmatpush2.bf16.msra.mxu0 0
        %1614 = vmatprep.subr.bf16.mxu0 0
        %1615 = vmatpush2.bf16.msra.mxu0 0
        %1616 = vmatprep.subr.bf16.mxu0 0
        %1617 = vmatpush2.bf16.msra.mxu0 0
        %1618 = vmatprep.mubr.bf16.mxu0 0
        %1619 = vmatmul.mubr.bf16.gmra.mxu0 %v1517
        %v1620 = vpop.f32.mrf.mxu0
        %v1621 = vadd.f32 0.0, %v1620
        %v1622 = vpop.f32.mrf.mxu0
        %v1623 = vpop.f32.mrf.mxu0
        %v1624 = vadd.f32 0.0, %v1623
        %v1625 = vpop.f32.mrf.mxu0
        %1626 = vmatprep.mubr.bf16.mxu0 0
        %1627 = vmatmul.mubr.bf16.gmra.mxu0 %v1518
        %v1628 = vpop.f32.mrf.mxu0
        %v1629 = vadd.f32 0.0, %v1628
        %v1630 = vpop.f32.mrf.mxu0
        %v1631 = vpop.f32.mrf.mxu0
        %v1632 = vadd.f32 0.0, %v1631
        %v1633 = vpop.f32.mrf.mxu0
        %1634 = vmatprep.mubr.bf16.mxu0 0
        %1635 = vmatmul.mubr.bf16.gmra.mxu0 %v1519
        %v1636 = vpop.f32.mrf.mxu0
        %v1637 = vadd.f32 0.0, %v1636
        %v1638 = vpop.f32.mrf.mxu0
        %v1639 = vpop.f32.mrf.mxu0
        %v1640 = vadd.f32 0.0, %v1639
        %v1641 = vpop.f32.mrf.mxu0
        %1642 = vmatprep.mubr.bf16.mxu0 0
        %1643 = vmatmul.mubr.bf16.gmra.mxu0 %v1520
        %v1644 = vpop.f32.mrf.mxu0
        %v1645 = vadd.f32 0.0, %v1644
        %v1646 = vpop.f32.mrf.mxu0
        %v1647 = vpop.f32.mrf.mxu0
        %v1648 = vadd.f32 0.0, %v1647
        %v1649 = vpop.f32.mrf.mxu0
        %1650 = vdwg.mxu0
        %v1651 = vadd.f32 %v1501, %v1621
        %v1652 = vadd.f32 %v1502, %v1624
        %v1653 = vadd.f32 %v1503, %v1629
        %v1654 = vadd.f32 %v1504, %v1632
        %v1655 = vadd.f32 %v1505, %v1637
        %v1656 = vadd.f32 %v1506, %v1640
        %v1657 = vadd.f32 %v1507, %v1645
        %v1658 = vadd.f32 %v1508, %v1648
        %v1659 = vld [vmem:[%s4] sm:$0x1]
        %v1661 = vlaneseq
        %v1662 = vshrl.u32 %v1661, 7
        %v1663 = vsub.s32 0, %v1662
        %v1664 = vrot.slane %v1659, %v1663
        %v1666 = vmul.f32 %v1651, %v1664
        %v1667 = vmul.f32 %v1652, %v1664
        %v1668 = vmul.f32 %v1653, %v1664
        %v1669 = vmul.f32 %v1654, %v1664
        %v1670 = vmul.f32 %v1655, %v1664
        %v1671 = vmul.f32 %v1656, %v1664
        %v1672 = vmul.f32 %v1657, %v1664
        %v1673 = vmul.f32 %v1658, %v1664
        %v1674 = vld [vmem:[%s5] sm:$0x1]
        %v1676 = vlaneseq
        %v1677 = vshrl.u32 %v1676, 7
        %v1678 = vsub.s32 0, %v1677
        %v1679 = vrot.slane %v1674, %v1678
        %v1681 = vadd.f32 %v1666, %v1679
        %v1682 = vadd.f32 %v1667, %v1679
        %v1683 = vadd.f32 %v1668, %v1679
        %v1684 = vadd.f32 %v1669, %v1679
        %v1685 = vadd.f32 %v1670, %v1679
        %v1686 = vadd.f32 %v1671, %v1679
        %v1687 = vadd.f32 %v1672, %v1679
        %v1688 = vadd.f32 %v1673, %v1679
        %v1689 = vld [vmem:[%s322] sm:$0xf]
        %v1690 = vld [vmem:[%s322 + $0x4] sm:$0xf]
        %v1691 = vld [vmem:[%s322 + $0x8] sm:$0xf]
        %v1692 = vld [vmem:[%s322 + $0xc] sm:$0xf]
        %v1693 = vld [vmem:[%s322 + $0x10] sm:$0xf]
        %v1694 = vld [vmem:[%s322 + $0x14] sm:$0xf]
        %v1695 = vld [vmem:[%s322 + $0x18] sm:$0xf]
        %v1696 = vld [vmem:[%s322 + $0x1c] sm:$0xf]
        %v1697 = vld [vmem:[%s3] sm:$0xf]
        %v1698 = vld [vmem:[%s3 + $0x4] sm:$0xf]
        %v1699 = vld [vmem:[%s3 + $0x8] sm:$0xf]
        %v1700 = vld [vmem:[%s3 + $0xc] sm:$0xf]
        %v1701 = vld [vmem:[%s3 + $0x10] sm:$0xf]
        %v1702 = vld [vmem:[%s3 + $0x14] sm:$0xf]
        %v1703 = vld [vmem:[%s3 + $0x18] sm:$0xf]
        %v1704 = vld [vmem:[%s3 + $0x1c] sm:$0xf]
        %v1705 = vld [vmem:[%s3 + $0x20] sm:$0xf]
        %v1706 = vld [vmem:[%s3 + $0x24] sm:$0xf]
        %v1707 = vld [vmem:[%s3 + $0x28] sm:$0xf]
        %v1708 = vld [vmem:[%s3 + $0x2c] sm:$0xf]
        %v1709 = vld [vmem:[%s3 + $0x30] sm:$0xf]
        %v1710 = vld [vmem:[%s3 + $0x34] sm:$0xf]
        %v1711 = vld [vmem:[%s3 + $0x38] sm:$0xf]
        %v1712 = vld [vmem:[%s3 + $0x3c] sm:$0xf]
        %v1721 = vunpack.c.l.b16 %v1689
        %v1722 = vunpack.c.l.b16 %v1690
        %v1723 = vunpack.c.l.b16 %v1691
        %v1724 = vunpack.c.l.b16 %v1692
        %v1725 = vunpack.c.l.b16 %v1693
        %v1726 = vunpack.c.l.b16 %v1694
        %v1727 = vunpack.c.l.b16 %v1695
        %v1728 = vunpack.c.l.b16 %v1696
        %v1729 = vpack.c.b16 %v1722, %v1721
        %v1730 = vpack.c.b16 %v1724, %v1723
        %v1731 = vpack.c.b16 %v1726, %v1725
        %v1732 = vpack.c.b16 %v1728, %v1727
        %v1753 = vunpack.c.l.b16 %v1697
        %v1754 = vunpack.c.l.b16 %v1698
        %v1755 = vunpack.c.l.b16 %v1699
        %v1756 = vunpack.c.l.b16 %v1700
        %v1757 = vunpack.c.l.b16 %v1701
        %v1758 = vunpack.c.l.b16 %v1702
        %v1759 = vunpack.c.l.b16 %v1703
        %v1760 = vunpack.c.l.b16 %v1704
        %v1761 = vunpack.c.l.b16 %v1705
        %v1762 = vunpack.c.l.b16 %v1706
        %v1763 = vunpack.c.l.b16 %v1707
        %v1764 = vunpack.c.l.b16 %v1708
        %v1765 = vunpack.c.l.b16 %v1709
        %v1766 = vunpack.c.l.b16 %v1710
        %v1767 = vunpack.c.l.b16 %v1711
        %v1768 = vunpack.c.l.b16 %v1712
        %v1769 = vpack.c.b16 %v1754, %v1753
        %v1770 = vpack.c.b16 %v1756, %v1755
        %v1771 = vpack.c.b16 %v1758, %v1757
        %v1772 = vpack.c.b16 %v1760, %v1759
        %v1773 = vpack.c.b16 %v1762, %v1761
        %v1774 = vpack.c.b16 %v1764, %v1763
        %v1775 = vpack.c.b16 %v1766, %v1765
        %v1776 = vpack.c.b16 %v1768, %v1767
        %1785 = vmatprep.subr.bf16.mxu0 0
        %1786 = vmatpush1.bf16.msra.mxu0 %v1776
        %1787 = vmatprep.subr.bf16.mxu0 0
        %1788 = vmatpush1.bf16.msra.mxu0 %v1775
        %1789 = vmatprep.subr.bf16.mxu0 0
        %1790 = vmatpush1.bf16.msra.mxu0 %v1774
        %1791 = vmatprep.subr.bf16.mxu0 0
        %1792 = vmatpush1.bf16.msra.mxu0 %v1773
        %1793 = vmatprep.subr.bf16.mxu0 0
        %1794 = vmatpush1.bf16.msra.mxu0 %v1772
        %1795 = vmatprep.subr.bf16.mxu0 0
        %1796 = vmatpush1.bf16.msra.mxu0 %v1771
        %1797 = vmatprep.subr.bf16.mxu0 0
        %1798 = vmatpush1.bf16.msra.mxu0 %v1770
        %1799 = vmatprep.subr.bf16.mxu0 0
        %1800 = vmatpush1.bf16.msra.mxu0 %v1769
        %1801 = vmatprep.subr.bf16.mxu0 0
        %1802 = vmatpush2.bf16.msra.mxu0 0
        %1803 = vmatprep.subr.bf16.mxu0 0
        %1804 = vmatpush2.bf16.msra.mxu0 0
        %1805 = vmatprep.subr.bf16.mxu0 0
        %1806 = vmatpush2.bf16.msra.mxu0 0
        %1807 = vmatprep.subr.bf16.mxu0 0
        %1808 = vmatpush2.bf16.msra.mxu0 0
        %1809 = vmatprep.subr.bf16.mxu0 0
        %1810 = vmatpush2.bf16.msra.mxu0 0
        %1811 = vmatprep.subr.bf16.mxu0 0
        %1812 = vmatpush2.bf16.msra.mxu0 0
        %1813 = vmatprep.subr.bf16.mxu0 0
        %1814 = vmatpush2.bf16.msra.mxu0 0
        %1815 = vmatprep.subr.bf16.mxu0 0
        %1816 = vmatpush2.bf16.msra.mxu0 0
        %1817 = vmatprep.mubr.bf16.mxu0 0
        %1818 = vmatmul.mubr.bf16.gmra.mxu0 %v1729
        %v1819 = vpop.f32.mrf.mxu0
        %v1820 = vadd.f32 0.0, %v1819
        %v1821 = vpop.f32.mrf.mxu0
        %v1822 = vpop.f32.mrf.mxu0
        %v1823 = vadd.f32 0.0, %v1822
        %v1824 = vpop.f32.mrf.mxu0
        %1825 = vmatprep.mubr.bf16.mxu0 0
        %1826 = vmatmul.mubr.bf16.gmra.mxu0 %v1730
        %v1827 = vpop.f32.mrf.mxu0
        %v1828 = vadd.f32 0.0, %v1827
        %v1829 = vpop.f32.mrf.mxu0
        %v1830 = vpop.f32.mrf.mxu0
        %v1831 = vadd.f32 0.0, %v1830
        %v1832 = vpop.f32.mrf.mxu0
        %1833 = vmatprep.mubr.bf16.mxu0 0
        %1834 = vmatmul.mubr.bf16.gmra.mxu0 %v1731
        %v1835 = vpop.f32.mrf.mxu0
        %v1836 = vadd.f32 0.0, %v1835
        %v1837 = vpop.f32.mrf.mxu0
        %v1838 = vpop.f32.mrf.mxu0
        %v1839 = vadd.f32 0.0, %v1838
        %v1840 = vpop.f32.mrf.mxu0
        %1841 = vmatprep.mubr.bf16.mxu0 0
        %1842 = vmatmul.mubr.bf16.gmra.mxu0 %v1732
        %v1843 = vpop.f32.mrf.mxu0
        %v1844 = vadd.f32 0.0, %v1843
        %v1845 = vpop.f32.mrf.mxu0
        %v1846 = vpop.f32.mrf.mxu0
        %v1847 = vadd.f32 0.0, %v1846
        %v1848 = vpop.f32.mrf.mxu0
        %1849 = vdwg.mxu0
        %v1850 = vadd.f32 %v1681, %v1820
        %v1851 = vadd.f32 %v1682, %v1823
        %v1852 = vadd.f32 %v1683, %v1828
        %v1853 = vadd.f32 %v1684, %v1831
        %v1854 = vadd.f32 %v1685, %v1836
        %v1855 = vadd.f32 %v1686, %v1839
        %v1856 = vadd.f32 %v1687, %v1844
        %v1857 = vadd.f32 %v1688, %v1847
        %v1858 = vmin.f32 %v1850, 20.0
        %v1859 = vmin.f32 %v1851, 20.0
        %v1860 = vmin.f32 %v1852, 20.0
        %v1861 = vmin.f32 %v1853, 20.0
        %v1862 = vmin.f32 %v1854, 20.0
        %v1863 = vmin.f32 %v1855, 20.0
        %v1864 = vmin.f32 %v1856, 20.0
        %v1865 = vmin.f32 %v1857, 20.0
        %v1866 = vmul.f32 %v1858, 1.442695
        %v1867 = vpow.pop %v1866
        %v1868 = vmul.f32 %v1859, 1.442695
        %v1869 = vpow.pop %v1868
        %v1870 = vmul.f32 %v1860, 1.442695
        %v1871 = vpow.pop %v1870
        %v1872 = vmul.f32 %v1861, 1.442695
        %v1873 = vpow.pop %v1872
        %v1874 = vmul.f32 %v1862, 1.442695
        %v1875 = vpow.pop %v1874
        %v1876 = vmul.f32 %v1863, 1.442695
        %v1877 = vpow.pop %v1876
        %v1878 = vmul.f32 %v1864, 1.442695
        %v1879 = vpow.pop %v1878
        %v1880 = vmul.f32 %v1865, 1.442695
        %v1881 = vpow.pop %v1880
        %v1882 = vadd.f32 %v1867, 2.0
        %v1883 = vadd.f32 %v1869, 2.0
        %v1884 = vadd.f32 %v1871, 2.0
        %v1885 = vadd.f32 %v1873, 2.0
        %v1886 = vadd.f32 %v1875, 2.0
        %v1887 = vadd.f32 %v1877, 2.0
        %v1888 = vadd.f32 %v1879, 2.0
        %v1889 = vadd.f32 %v1881, 2.0
        %v1890 = vmul.f32 %v1867, %v1882
        %v1891 = vmul.f32 %v1869, %v1883
        %v1892 = vmul.f32 %v1871, %v1884
        %v1893 = vmul.f32 %v1873, %v1885
        %v1894 = vmul.f32 %v1875, %v1886
        %v1895 = vmul.f32 %v1877, %v1887
        %v1896 = vmul.f32 %v1879, %v1888
        %v1897 = vmul.f32 %v1881, %v1889
        %v1898 = vmul.f32 %v1850, %v1890
        %v1899 = vmul.f32 %v1851, %v1891
        %v1900 = vmul.f32 %v1852, %v1892
        %v1901 = vmul.f32 %v1853, %v1893
        %v1902 = vmul.f32 %v1854, %v1894
        %v1903 = vmul.f32 %v1855, %v1895
        %v1904 = vmul.f32 %v1856, %v1896
        %v1905 = vmul.f32 %v1857, %v1897
        %v1906 = vadd.f32 %v1890, 2.0
        %v1907 = vadd.f32 %v1891, 2.0
        %v1908 = vadd.f32 %v1892, 2.0
        %v1909 = vadd.f32 %v1893, 2.0
        %v1910 = vadd.f32 %v1894, 2.0
        %v1911 = vadd.f32 %v1895, 2.0
        %v1912 = vadd.f32 %v1896, 2.0
        %v1913 = vadd.f32 %v1897, 2.0
        %v1914 = vrcp.pop %v1906
        %v1915 = vrcp.pop %v1907
        %v1916 = vrcp.pop %v1908
        %v1917 = vrcp.pop %v1909
        %v1918 = vrcp.pop %v1910
        %v1919 = vrcp.pop %v1911
        %v1920 = vrcp.pop %v1912
        %v1921 = vrcp.pop %v1913
        %v1922 = vmul.f32 %v1898, %v1914
        %v1923 = vmul.f32 %v1899, %v1915
        %v1924 = vmul.f32 %v1900, %v1916
        %v1925 = vmul.f32 %v1901, %v1917
        %v1926 = vmul.f32 %v1902, %v1918
        %v1927 = vmul.f32 %v1903, %v1919
        %v1928 = vmul.f32 %v1904, %v1920
        %v1929 = vmul.f32 %v1905, %v1921
        %vm1930 = vcmp.gt.f32.partialorder %v1850, 20.0
        %vm1931 = vcmp.gt.f32.partialorder %v1851, 20.0
        %vm1932 = vcmp.gt.f32.partialorder %v1852, 20.0
        %vm1933 = vcmp.gt.f32.partialorder %v1853, 20.0
        %vm1934 = vcmp.gt.f32.partialorder %v1854, 20.0
        %vm1935 = vcmp.gt.f32.partialorder %v1855, 20.0
        %vm1936 = vcmp.gt.f32.partialorder %v1856, 20.0
        %vm1937 = vcmp.gt.f32.partialorder %v1857, 20.0
        %v1938 = vsel %vm1930, %v1850, %v1922
        %v1939 = vsel %vm1931, %v1851, %v1923
        %v1940 = vsel %vm1932, %v1852, %v1924
        %v1941 = vsel %vm1933, %v1853, %v1925
        %v1942 = vsel %vm1934, %v1854, %v1926
        %v1943 = vsel %vm1935, %v1855, %v1927
        %v1944 = vsel %vm1936, %v1856, %v1928
        %v1945 = vsel %vm1937, %v1857, %v1929
        %v1946 = vadd.f32 %v1938, %v1939
        %v1947 = vadd.f32 %v1946, %v1940
        %v1948 = vadd.f32 %v1947, %v1941
        %v1949 = vadd.f32 %v1948, %v1942
        %v1950 = vadd.f32 %v1949, %v1943
        %v1951 = vadd.f32 %v1950, %v1944
        %v1952 = vadd.f32 %v1951, %v1945
        %v1953 = vrot.slane %v1952, 4
        %v1954 = vadd.f32 %v1952, %v1953
        %v1955 = vrot.slane %v1954, 2
        %v1956 = vadd.f32 %v1954, %v1955
        %v1957 = vrot.slane %v1956, 1
        %v1958 = vadd.f32 %v1956, %v1957
        %v1959 = vmul.f32 %v1958, 0.015625
        %v1960 = vld [vmem:[%s6] sm:$0xff]
        %v1961 = vld [vmem:[%s6 + $0x8] sm:$0xff]
        %v1962 = vld [vmem:[%s6 + $0x10] sm:$0xff]
        %v1963 = vld [vmem:[%s6 + $0x18] sm:$0xff]
        %v1964 = vld [vmem:[%s6 + $0x20] sm:$0xff]
        %v1965 = vld [vmem:[%s6 + $0x28] sm:$0xff]
        %v1966 = vld [vmem:[%s6 + $0x30] sm:$0xff]
        %v1967 = vld [vmem:[%s6 + $0x38] sm:$0xff]
        %v1968 = vld [vmem:[%s6 + $0x40] sm:$0xff]
        %v1969 = vld [vmem:[%s6 + $0x48] sm:$0xff]
        %v1970 = vld [vmem:[%s6 + $0x50] sm:$0xff]
        %v1971 = vld [vmem:[%s6 + $0x58] sm:$0xff]
        %v1972 = vld [vmem:[%s6 + $0x60] sm:$0xff]
        %v1973 = vld [vmem:[%s6 + $0x68] sm:$0xff]
        %v1974 = vld [vmem:[%s6 + $0x70] sm:$0xff]
        %v1975 = vld [vmem:[%s6 + $0x78] sm:$0xff]
        %v1976 = vld [vmem:[%s7] sm:$0x1]
        %1977 = vmatprep.subr.mxu0 0.0
        %1978 = vmatpush1.msra.mxu0 %v1975
        %1979 = vmatprep.subr.mxu0 0.0
        %1980 = vmatpush1.msra.mxu0 %v1974
        %1981 = vmatprep.subr.mxu0 0.0
        %1982 = vmatpush1.msra.mxu0 %v1973
        %1983 = vmatprep.subr.mxu0 0.0
        %1984 = vmatpush1.msra.mxu0 %v1972
        %1985 = vmatprep.subr.mxu0 0.0
        %1986 = vmatpush1.msra.mxu0 %v1971
        %1987 = vmatprep.subr.mxu0 0.0
        %1988 = vmatpush1.msra.mxu0 %v1970
        %1989 = vmatprep.subr.mxu0 0.0
        %1990 = vmatpush1.msra.mxu0 %v1969
        %1991 = vmatprep.subr.mxu0 0.0
        %1992 = vmatpush1.msra.mxu0 %v1968
        %1993 = vmatprep.subr.mxu0 0.0
        %1994 = vmatpush1.msra.mxu0 %v1967
        %1995 = vmatprep.subr.mxu0 0.0
        %1996 = vmatpush1.msra.mxu0 %v1966
        %1997 = vmatprep.subr.mxu0 0.0
        %1998 = vmatpush1.msra.mxu0 %v1965
        %1999 = vmatprep.subr.mxu0 0.0
        %2000 = vmatpush1.msra.mxu0 %v1964
        %2001 = vmatprep.subr.mxu0 0.0
        %2002 = vmatpush1.msra.mxu0 %v1963
        %2003 = vmatprep.subr.mxu0 0.0
        %2004 = vmatpush1.msra.mxu0 %v1962
        %2005 = vmatprep.subr.mxu0 0.0
        %2006 = vmatpush1.msra.mxu0 %v1961
        %2007 = vmatprep.subr.mxu0 0.0
        %2008 = vmatpush1.msra.mxu0 %v1960
        %2009 = vmatprep.subr.mxu0 0.0
        %2010 = vmatpush2.msra.mxu0 0.0
        %2011 = vmatprep.subr.mxu0 0.0
        %2012 = vmatpush2.msra.mxu0 0.0
        %2013 = vmatprep.subr.mxu0 0.0
        %2014 = vmatpush2.msra.mxu0 0.0
        %2015 = vmatprep.subr.mxu0 0.0
        %2016 = vmatpush2.msra.mxu0 0.0
        %2017 = vmatprep.subr.mxu0 0.0
        %2018 = vmatpush2.msra.mxu0 0.0
        %2019 = vmatprep.subr.mxu0 0.0
        %2020 = vmatpush2.msra.mxu0 0.0
        %2021 = vmatprep.subr.mxu0 0.0
        %2022 = vmatpush2.msra.mxu0 0.0
        %2023 = vmatprep.subr.mxu0 0.0
        %2024 = vmatpush2.msra.mxu0 0.0
        %2025 = vmatprep.subr.mxu0 0.0
        %2026 = vmatpush2.msra.mxu0 0.0
        %2027 = vmatprep.subr.mxu0 0.0
        %2028 = vmatpush2.msra.mxu0 0.0
        %2029 = vmatprep.subr.mxu0 0.0
        %2030 = vmatpush2.msra.mxu0 0.0
        %2031 = vmatprep.subr.mxu0 0.0
        %2032 = vmatpush2.msra.mxu0 0.0
        %2033 = vmatprep.subr.mxu0 0.0
        %2034 = vmatpush2.msra.mxu0 0.0
        %2035 = vmatprep.subr.mxu0 0.0
        %2036 = vmatpush2.msra.mxu0 0.0
        %2037 = vmatprep.subr.mxu0 0.0
        %2038 = vmatpush2.msra.mxu0 0.0
        %2039 = vmatprep.subr.mxu0 0.0
        %2040 = vmatpush2.msra.mxu0 0.0
        %2041 = vmatprep.mubr.f32.mxu0 0.0
        %2042 = vmatmul.mubr.f32.gmra.mxu0 %v1959
        %v2043 = vpop.f32.mrf.mxu0
        %v2044 = vadd.f32 %v1976, %v2043
        %v2045 = vpop.f32.mrf.mxu0
        %2046 = vdwg.mxu0
        %2047 = vst [vmem:[%s312] sm:$0x1] %v2044
        %s2048 = sand.u32 %s208, 1
        %s2049 = scalar_lea.sflag [#allocation3], %s2048
        %s2050 = sand.u32 %s208, 1
        %s2051 = scalar_lea.vmem [#allocation2], %s2050
        // Predicated region
        $region53: #{light_featmap_to_latent.3} parent=51 // pred_check
          %p2052 = pneg %p218
        $region54: #{light_featmap_to_latent.3} parent=51 // pred_check_branch
          %2054 = sbr.rel (%p2052) target = $region56
        $region55: #{light_featmap_to_latent.3} parent=51 // pred_region
          %s2056 = ssub.s32 16, 16
          %2057 = vsyncadd %s2049, %s2056
          %s2058 = smul.addr %s22, 16
          %s2059 = scalar_lea.hbm %s8, %s2058
          %s2061 = sshll.u32 %s2051, 4
          %s2062 = int_to_ptr.vmem [resolvable:$true] %s2061
          %2064 = dma.vmem_to_hbm [thread:$0]  %s2062, 16, %s2059, %s2049
        $region56: #{light_featmap_to_latent.3} parent=51 // pred_fallthru
          _
      $region52: #{light_featmap_to_latent.3} parent=5 // pred_fallthru
        _
      %p2065 = scmp.le.s32.totalorder 2, %s17
      // Predicated region
      $region57: #{light_featmap_to_latent.3} parent=5 // pred_check
        %p2066 = pneg %p2065
      $region58: #{light_featmap_to_latent.3} parent=5 // pred_check_branch
        %2068 = sbr.rel (%p2066) target = $region60
      $region59: #{light_featmap_to_latent.3} parent=5 // pred_region
        %s2069 = ssub.s32 %s17, 2
        // Predicated region
        $region61: #{light_featmap_to_latent.3} parent=59 // pred_check
          %p2070 = pneg %p224
        $region62: #{light_featmap_to_latent.3} parent=59 // pred_check_branch
          %2072 = sbr.rel (%p2070) target = $region64
        $region63: #{light_featmap_to_latent.3} parent=59 // pred_region
          %s2073 = sand.u32 %s209, 1
          %s2074 = scalar_lea.sflag [#allocation3], %s2073
          %s2075 = sand.u32 %s209, 1
          %s2076 = scalar_lea.vmem [#allocation2], %s2075
          %2077 = dma.done %s2074, 16
        $region64: #{light_featmap_to_latent.3} parent=59 // pred_fallthru
          _
      $region60: #{light_featmap_to_latent.3} parent=5 // pred_fallthru
        _
    $region6: #{light_featmap_to_latent.3} parent=1 // loop_footer
      %s21 = sadd.s32 1, %s17
    $region7: #{light_featmap_to_latent.3} parent=1 // loop_footer_branch
      %16 = sbr.rel target = $region3
    $region8: #{light_featmap_to_latent.3} parent=1 // loop_exit
      _
    %2078 = vsyncpa [#allocation3], 1
    %s2079 = scalar_lea.sflag [#allocation3], 1
    %2080 = vsyncpa %s2079, 1

</llo_original>
